<compile_context>
chip_gen: v7x
topology: tpu7x:2x2x1
jax: 0.10.0
libtpu: 0.0.40
codegen_flags: <defaults>
</compile_context>

<pallas_src>
import math
import functools

import jax
import jax.numpy as jnp
from jax.experimental import pallas as pl
from jax.experimental.pallas import tpu as pltpu


def _cbam_kernel(sa_w_ref, fc_w_ref, fc_b_ref, x_ref, o_ref, *, ksize, H, W):
    """Fused CBAM forward for one block of Bt batch elements.

    sa_w_ref: (2*k*k,) SMEM f32 -- SpatialAttention conv weight, [c_in, kh, kw] flat
    fc_w_ref: (C, C)   VMEM f32 -- ChannelAttention 1x1 conv weight (C_out, C_in)
    fc_b_ref: (1, C)   VMEM f32 -- ChannelAttention bias (row layout)
    x_ref:    (Bt, C, H*W) VMEM -- lane-dense input block
    o_ref:    (Bt, C, H*W) VMEM -- lane-dense output block
    """
    xb = x_ref[...]                                   # (Bt, C, HW), input dtype
    Bt, C, HW = xb.shape
    pad = (ksize - 1) // 2
    kk = ksize * ksize

    # ---- Channel attention: global avg pool -> 1x1 conv (+bias) -> sigmoid ----
    # Lane reduce over H*W; FC as VPU broadcast-multiply + lane reduce (no MXU
    # single-column matvec round-trip).
    pooled = jnp.mean(xb.astype(jnp.float32), axis=2)                 # (Bt, C)
    logits = jnp.sum(fc_w_ref[...][None, :, :] * pooled[:, None, :],
                     axis=2) + fc_b_ref[...]                          # (Bt, C)
    gate_c = jax.nn.sigmoid(logits)                                   # (Bt, C) f32
    y = xb * gate_c[:, :, None].astype(xb.dtype)                      # (Bt, C, HW)

    # ---- Spatial attention: [mean_c, max_c] -> k x k conv (zero pad) -> sigmoid ----
    # NOTE: for very large C the channel-mean could instead run on the MXU as
    # (gate_c/C) @ x; kept on the VPU/XLU here to preserve exact f32 pooling.
    yf_stats_avg = jnp.mean(y.astype(jnp.float32), axis=1)            # (Bt, HW)
    yf_stats_max = jnp.max(y.astype(jnp.float32), axis=1)             # (Bt, HW)

    # Only these tiny rows get reshaped back to the (H, W) plane for the conv.
    s_avg = yf_stats_avg.reshape(Bt, H, W)
    s_max = yf_stats_max.reshape(Bt, H, W)

    def pad2d(a):                                                     # (Bt, H, W)
        zr = jnp.zeros((Bt, pad, W), jnp.float32)
        a = jnp.concatenate([zr, a, zr], axis=1)                      # (Bt, H+2p, W)
        zc = jnp.zeros((Bt, H + 2 * pad, pad), jnp.float32)
        return jnp.concatenate([zc, a, zc], axis=2)                   # (Bt, H+2p, W+2p)

    avg_p = pad2d(s_avg)
    max_p = pad2d(s_max)

    # Hoist the lane-direction (kw) shifts: k shifted copies per plane, reused
    # across all kh rows (instead of 2*k*k unaligned lane slices).
    avg_cols = [avg_p[:, :, kw:kw + W] for kw in range(ksize)]        # (Bt, H+2p, W)
    max_cols = [max_p[:, :, kw:kw + W] for kw in range(ksize)]

    # Multiple accumulators so the 4 VALU slots can pack (no 98-deep serial chain).
    n_acc = 4
    accs = [jnp.zeros((Bt, H, W), jnp.float32) for _ in range(n_acc)]
    idx = 0
    for kw in range(ksize):                          # static, fully unrolled (k*k tiny)
        a_col = avg_cols[kw]
        m_col = max_cols[kw]
        for kh in range(ksize):
            w_avg = sa_w_ref[kh * ksize + kw]        # scalar from SMEM
            w_max = sa_w_ref[kk + kh * ksize + kw]   # scalar from SMEM
            term = (w_avg * a_col[:, kh:kh + H, :]
                    + w_max * m_col[:, kh:kh + H, :])
            accs[idx % n_acc] = accs[idx % n_acc] + term
            idx += 1
    conv = (accs[0] + accs[1]) + (accs[2] + accs[3])                  # (Bt, H, W)

    gate_s = jax.nn.sigmoid(conv).reshape(Bt, 1, HW)                  # (Bt, 1, HW) f32

    # Full-width lane-dense store.
    o_ref[...] = (y * gate_s.astype(y.dtype)).astype(o_ref.dtype)


def cbam_forward(x, fc_w, fc_b, sa_w):
    """x: (B,C,H,W); fc_w: (C,C); fc_b: (C,); sa_w: (2,k,k) [mean-channel, max-channel]."""
    B, C, H, W = x.shape
    HW = H * W
    ksize = int(sa_w.shape[-1])
    itemsize = x.dtype.itemsize

    # Lane-dense operands: (B, C, H*W) is a free reshape of contiguous NCHW.
    x_flat = x.reshape(B, C, HW)
    fc_w2 = fc_w.reshape(C, C).astype(jnp.float32)
    fc_b2 = fc_b.reshape(1, C).astype(jnp.float32)
    sa_w_flat = sa_w.reshape(-1).astype(jnp.float32)          # (2*k*k,)

    # Block batching: amortize per-step overhead for small feature maps, but keep
    # >= 2 grid steps (when B >= 2) so both v7x TensorCores have work.
    per_batch_bytes = C * HW * itemsize
    bt = 1
    for cand in range(1, B + 1):
        if B % cand != 0:
            continue
        if cand > 1 and cand * per_batch_bytes > 512 * 1024:
            continue
        if B >= 2 and (B // cand) < 2:
            continue
        bt = cand
    grid_b = B // bt

    # Generation-aware VMEM budget (v5e/v6e: 128 MiB, v7x: 64 MiB physical).
    try:
        phys_vmem = int(pltpu.get_tpu_info().vmem_capacity_bytes)
    except Exception:
        phys_vmem = 64 * 1024 * 1024      # conservative (v7x-sized) fallback
    block_in = bt * C * HW * itemsize
    block_f32 = bt * C * HW * 4
    plane_f32 = bt * (H + ksize) * (W + ksize) * 4
    need = (4 * block_in                       # double-buffered in + out blocks
            + 2 * block_f32                    # y + one elementwise temporary
            + (2 * ksize + 12) * plane_f32     # padded planes, shifted copies, accumulators
            + 2 * C * C * 4                    # fc weights (double-buffered)
            + (2 << 20))                       # headroom
    vmem_limit = int(min(int(phys_vmem * 0.75), max(8 * 1024 * 1024, need)))
    # TODO(synk): for blocks larger than ~75% of v7x VMEM (e.g. 256x80x80 f32 with
    # bt>1), add an H*W tile axis with a pooled-accumulator pre-pass.

    cost = pl.CostEstimate(
        flops=int(B * (6 * C * HW + 4 * ksize * ksize * HW + 2 * C * C)),
        transcendentals=int(B * (C + HW)),
        bytes_accessed=int(2 * B * C * HW * itemsize),
    )

    out_flat = pl.pallas_call(
        functools.partial(_cbam_kernel, ksize=ksize, H=H, W=W),
        out_shape=jax.ShapeDtypeStruct((B, C, HW), x.dtype),
        grid=(grid_b,),
        in_specs=[
            pl.BlockSpec((2 * ksize * ksize,), lambda b: (0,),
                         memory_space=pltpu.MemorySpace.SMEM),    # spatial conv weights
            pl.BlockSpec((C, C), lambda b: (0, 0)),               # fc weight
            pl.BlockSpec((1, C), lambda b: (0, 0)),               # fc bias (row)
            pl.BlockSpec((bt, C, HW), lambda b: (b, 0, 0)),       # x, bt batches per step
        ],
        out_specs=pl.BlockSpec((bt, C, HW), lambda b: (b, 0, 0)),
        compiler_params=pltpu.CompilerParams(
            dimension_semantics=("parallel",),    # shard batch blocks over TCs
            vmem_limit_bytes=vmem_limit,
        ),
        cost_estimate=cost,
    )(sa_w_flat, fc_w2, fc_b2, x_flat)

    return out_flat.reshape(B, C, H, W)


def cbam_reference(x, fc_w, fc_b, sa_w):
    """Plain-JAX reference matching the PyTorch CBAM forward (all f32 elementwise math)."""
    B, C, H, W = x.shape
    k = sa_w.shape[-1]
    pad = (k - 1) // 2
    xf = x.astype(jnp.float32)

    # Channel attention
    pooled = jnp.mean(xf, axis=(2, 3))                                       # (B, C)
    logits = jnp.sum(fc_w[None, :, :] * pooled[:, None, :], axis=-1) + fc_b[None, :]
    gate_c = jax.nn.sigmoid(logits)                                          # (B, C)
    y = xf * gate_c[:, :, None, None]                                        # (B, C, H, W)

    # Spatial attention
    s_avg = jnp.mean(y, axis=1)                                              # (B, H, W)
    s_max = jnp.max(y, axis=1)                                               # (B, H, W)
    sp = jnp.pad(s_avg, ((0, 0), (pad, pad), (pad, pad)))
    mp = jnp.pad(s_max, ((0, 0), (pad, pad), (pad, pad)))
    conv = jnp.zeros((B, H, W), jnp.float32)
    for kh in range(k):
        for kw in range(k):
            conv = conv + sa_w[0, kh, kw] * sp[:, kh:kh + H, kw:kw + W] \
                        + sa_w[1, kh, kw] * mp[:, kh:kh + H, kw:kw + W]
    gate_s = jax.nn.sigmoid(conv)                                            # (B, H, W)
    return (y * gate_s[:, None, :, :]).astype(x.dtype)


if __name__ == "__main__":
    B, C, H, W = 2, 8, 16, 16
    ksize = 7  # CBAM default spatial kernel size

    key = jax.random.PRNGKey(0)
    kx, kw1, kb1, kw2 = jax.random.split(key, 4)
    x = jax.random.normal(kx, (B, C, H, W), dtype=jnp.float32)

    # ChannelAttention.fc = Conv2d(C, C, 1, bias=True): uniform(-1/sqrt(C), 1/sqrt(C))
    bound_fc = 1.0 / math.sqrt(C)
    fc_w = jax.random.uniform(kw1, (C, C), minval=-bound_fc, maxval=bound_fc,
                              dtype=jnp.float32)
    fc_b = jax.random.uniform(kb1, (C,), minval=-bound_fc, maxval=bound_fc,
                              dtype=jnp.float32)

    # SpatialAttention.cv1 = Conv2d(2, 1, 7, padding=3, bias=False)
    bound_sa = 1.0 / math.sqrt(2 * ksize * ksize)
    sa_w = jax.random.uniform(kw2, (2, ksize, ksize), minval=-bound_sa,
                              maxval=bound_sa, dtype=jnp.float32)

    out = cbam_forward(x, fc_w, fc_b, sa_w)
    out = jax.block_until_ready(out)

    ref = cbam_reference(x, fc_w, fc_b, sa_w)
    assert out.shape == (B, C, H, W)
    assert jnp.allclose(out, ref, atol=1e-4, rtol=1e-4), "mismatch vs reference"

    print("KERNEL_OK")
</pallas_src>

<mosaic_0001>
module attributes {stable_mosaic.version = 11 : i64} {
  func.func @_cbam_kernel(%arg0: i32, %arg1: memref<98xf32, #tpu.memory_space<smem>>, %arg2: memref<8x8xf32, #tpu.memory_space<vmem>>, %arg3: memref<1x8xf32, #tpu.memory_space<vmem>>, %arg4: memref<1x8x256xf32, #tpu.memory_space<vmem>>, %arg5: memref<1x8x256xf32, #tpu.memory_space<vmem>>) attributes {dimension_semantics = [#tpu.dimension_semantics<parallel>], iteration_bounds = array<i64: 2>, scalar_prefetch = 0 : i64, scratch_operands = 0 : i64, tpu.core_type = #tpu.core_type<tc>, window_params = [{transform_indices = @transform_0, window_bounds = array<i64: 98>}, {pipeline_mode = #tpu.pipeline_mode<synchronous>, transform_indices = @transform_1, window_bounds = array<i64: 8, 8>}, {pipeline_mode = #tpu.pipeline_mode<synchronous>, transform_indices = @transform_2, window_bounds = array<i64: 1, 8>}, {transform_indices = @transform_3, window_bounds = array<i64: 1, 8, 256>}, {transform_indices = @transform_4, window_bounds = array<i64: 1, 8, 256>}]} {
    %c0 = arith.constant 0 : index
    %c0_0 = arith.constant 0 : index
    %c0_1 = arith.constant 0 : index
    %0 = vector.load %arg4[%c0, %c0_0, %c0_1] : memref<1x8x256xf32, #tpu.memory_space<vmem>>, vector<1x8x256xf32>
    %cst = arith.constant dense<0.000000e+00> : vector<1x8xf32>
    %1 = vector.multi_reduction <add>, %0, %cst [2] : vector<1x8x256xf32> to vector<1x8xf32>
    %cst_2 = arith.constant 2.560000e+02 : f32
    %2 = vector.broadcast %cst_2 : f32 to vector<1x8xf32>
    %3 = arith.divf %1, %2 : vector<1x8xf32>
    %c0_3 = arith.constant 0 : index
    %c0_4 = arith.constant 0 : index
    %4 = vector.load %arg2[%c0_3, %c0_4] : memref<8x8xf32, #tpu.memory_space<vmem>>, vector<8x8xf32>
    %5 = vector.shape_cast %4 : vector<8x8xf32> to vector<1x8x8xf32>
    %6 = vector.shape_cast %3 : vector<1x8xf32> to vector<1x1x8xf32>
    %7 = vector.broadcast %6 : vector<1x1x8xf32> to vector<1x8x8xf32>
    %8 = arith.mulf %5, %7 : vector<1x8x8xf32>
    %cst_5 = arith.constant dense<0.000000e+00> : vector<1x8xf32>
    %9 = vector.multi_reduction <add>, %8, %cst_5 [2] : vector<1x8x8xf32> to vector<1x8xf32>
    %c0_6 = arith.constant 0 : index
    %c0_7 = arith.constant 0 : index
    %10 = vector.load %arg3[%c0_6, %c0_7] : memref<1x8xf32, #tpu.memory_space<vmem>>, vector<1x8xf32>
    %11 = arith.addf %9, %10 : vector<1x8xf32>
    %12 = arith.negf %11 : vector<1x8xf32>
    %13 = math.exp %12 : vector<1x8xf32>
    %cst_8 = arith.constant 1.000000e+00 : f32
    %14 = vector.broadcast %cst_8 : f32 to vector<1x8xf32>
    %15 = arith.addf %14, %13 : vector<1x8xf32>
    %16 = arith.divf %14, %15 : vector<1x8xf32>
    %17 = vector.shape_cast %16 : vector<1x8xf32> to vector<1x8x1xf32>
    %18 = vector.broadcast %17 : vector<1x8x1xf32> to vector<1x8x256xf32>
    %19 = arith.mulf %0, %18 : vector<1x8x256xf32>
    %cst_9 = arith.constant dense<0.000000e+00> : vector<1x256xf32>
    %20 = vector.multi_reduction <add>, %19, %cst_9 [1] : vector<1x8x256xf32> to vector<1x256xf32>
    %cst_10 = arith.constant 8.000000e+00 : f32
    %21 = vector.broadcast %cst_10 : f32 to vector<1x256xf32>
    %22 = arith.divf %20, %21 : vector<1x256xf32>
    %cst_11 = arith.constant dense<0xFF800000> : vector<1x256xf32>
    %23 = vector.multi_reduction <maximumf>, %19, %cst_11 [1] : vector<1x8x256xf32> to vector<1x256xf32>
    %24 = vector.shape_cast %22 : vector<1x256xf32> to vector<1x16x16xf32>
    %25 = vector.shape_cast %23 : vector<1x256xf32> to vector<1x16x16xf32>
    %cst_12 = arith.constant 0.000000e+00 : f32
    %26 = vector.broadcast %cst_12 : f32 to vector<1x3x16xf32>
    %27 = tpu.concatenate %26, %24, %26 in 1 : vector<1x3x16xf32>, vector<1x16x16xf32>, vector<1x3x16xf32> -> vector<1x22x16xf32>
    %cst_13 = arith.constant 0.000000e+00 : f32
    %28 = vector.broadcast %cst_13 : f32 to vector<1x22x3xf32>
    %29 = tpu.concatenate %28, %27, %28 in 2 : vector<1x22x3xf32>, vector<1x22x16xf32>, vector<1x22x3xf32> -> vector<1x22x22xf32>
    %cst_14 = arith.constant 0.000000e+00 : f32
    %30 = vector.broadcast %cst_14 : f32 to vector<1x3x16xf32>
    %31 = tpu.concatenate %30, %25, %30 in 1 : vector<1x3x16xf32>, vector<1x16x16xf32>, vector<1x3x16xf32> -> vector<1x22x16xf32>
    %cst_15 = arith.constant 0.000000e+00 : f32
    %32 = vector.broadcast %cst_15 : f32 to vector<1x22x3xf32>
    %33 = tpu.concatenate %32, %31, %32 in 2 : vector<1x22x3xf32>, vector<1x22x16xf32>, vector<1x22x3xf32> -> vector<1x22x22xf32>
    %34 = vector.extract_strided_slice %29 {offsets = [0, 0, 0], sizes = [1, 22, 16], strides = [1, 1, 1]} : vector<1x22x22xf32> to vector<1x22x16xf32>
    %35 = vector.extract_strided_slice %29 {offsets = [0, 0, 1], sizes = [1, 22, 16], strides = [1, 1, 1]} : vector<1x22x22xf32> to vector<1x22x16xf32>
    %36 = vector.extract_strided_slice %29 {offsets = [0, 0, 2], sizes = [1, 22, 16], strides = [1, 1, 1]} : vector<1x22x22xf32> to vector<1x22x16xf32>
    %37 = vector.extract_strided_slice %29 {offsets = [0, 0, 3], sizes = [1, 22, 16], strides = [1, 1, 1]} : vector<1x22x22xf32> to vector<1x22x16xf32>
    %38 = vector.extract_strided_slice %29 {offsets = [0, 0, 4], sizes = [1, 22, 16], strides = [1, 1, 1]} : vector<1x22x22xf32> to vector<1x22x16xf32>
    %39 = vector.extract_strided_slice %29 {offsets = [0, 0, 5], sizes = [1, 22, 16], strides = [1, 1, 1]} : vector<1x22x22xf32> to vector<1x22x16xf32>
    %40 = vector.extract_strided_slice %29 {offsets = [0, 0, 6], sizes = [1, 22, 16], strides = [1, 1, 1]} : vector<1x22x22xf32> to vector<1x22x16xf32>
    %41 = vector.extract_strided_slice %33 {offsets = [0, 0, 0], sizes = [1, 22, 16], strides = [1, 1, 1]} : vector<1x22x22xf32> to vector<1x22x16xf32>
    %42 = vector.extract_strided_slice %33 {offsets = [0, 0, 1], sizes = [1, 22, 16], strides = [1, 1, 1]} : vector<1x22x22xf32> to vector<1x22x16xf32>
    %43 = vector.extract_strided_slice %33 {offsets = [0, 0, 2], sizes = [1, 22, 16], strides = [1, 1, 1]} : vector<1x22x22xf32> to vector<1x22x16xf32>
    %44 = vector.extract_strided_slice %33 {offsets = [0, 0, 3], sizes = [1, 22, 16], strides = [1, 1, 1]} : vector<1x22x22xf32> to vector<1x22x16xf32>
    %45 = vector.extract_strided_slice %33 {offsets = [0, 0, 4], sizes = [1, 22, 16], strides = [1, 1, 1]} : vector<1x22x22xf32> to vector<1x22x16xf32>
    %46 = vector.extract_strided_slice %33 {offsets = [0, 0, 5], sizes = [1, 22, 16], strides = [1, 1, 1]} : vector<1x22x22xf32> to vector<1x22x16xf32>
    %47 = vector.extract_strided_slice %33 {offsets = [0, 0, 6], sizes = [1, 22, 16], strides = [1, 1, 1]} : vector<1x22x22xf32> to vector<1x22x16xf32>
    %cst_16 = arith.constant 0.000000e+00 : f32
    %48 = vector.broadcast %cst_16 : f32 to vector<1x16x16xf32>
    %cst_17 = arith.constant 0.000000e+00 : f32
    %49 = vector.broadcast %cst_17 : f32 to vector<1x16x16xf32>
    %cst_18 = arith.constant 0.000000e+00 : f32
    %50 = vector.broadcast %cst_18 : f32 to vector<1x16x16xf32>
    %cst_19 = arith.constant 0.000000e+00 : f32
    %51 = vector.broadcast %cst_19 : f32 to vector<1x16x16xf32>
    %c0_20 = arith.constant 0 : index
    %52 = memref.load %arg1[%c0_20] : memref<98xf32, #tpu.memory_space<smem>>
    %c49 = arith.constant 49 : index
    %53 = memref.load %arg1[%c49] : memref<98xf32, #tpu.memory_space<smem>>
    %54 = vector.extract_strided_slice %34 {offsets = [0, 0, 0], sizes = [1, 16, 16], strides = [1, 1, 1]} : vector<1x22x16xf32> to vector<1x16x16xf32>
    %55 = vector.broadcast %52 : f32 to vector<1x16x16xf32>
    %56 = arith.mulf %55, %54 : vector<1x16x16xf32>
    %57 = vector.extract_strided_slice %41 {offsets = [0, 0, 0], sizes = [1, 16, 16], strides = [1, 1, 1]} : vector<1x22x16xf32> to vector<1x16x16xf32>
    %58 = vector.broadcast %53 : f32 to vector<1x16x16xf32>
    %59 = arith.mulf %58, %57 : vector<1x16x16xf32>
    %60 = arith.addf %56, %59 : vector<1x16x16xf32>
    %61 = arith.addf %48, %60 : vector<1x16x16xf32>
    %c7 = arith.constant 7 : index
    %62 = memref.load %arg1[%c7] : memref<98xf32, #tpu.memory_space<smem>>
    %c56 = arith.constant 56 : index
    %63 = memref.load %arg1[%c56] : memref<98xf32, #tpu.memory_space<smem>>
    %64 = vector.extract_strided_slice %34 {offsets = [0, 1, 0], sizes = [1, 16, 16], strides = [1, 1, 1]} : vector<1x22x16xf32> to vector<1x16x16xf32>
    %65 = vector.broadcast %62 : f32 to vector<1x16x16xf32>
    %66 = arith.mulf %65, %64 : vector<1x16x16xf32>
    %67 = vector.extract_strided_slice %41 {offsets = [0, 1, 0], sizes = [1, 16, 16], strides = [1, 1, 1]} : vector<1x22x16xf32> to vector<1x16x16xf32>
    %68 = vector.broadcast %63 : f32 to vector<1x16x16xf32>
    %69 = arith.mulf %68, %67 : vector<1x16x16xf32>
    %70 = arith.addf %66, %69 : vector<1x16x16xf32>
    %71 = arith.addf %49, %70 : vector<1x16x16xf32>
    %c14 = arith.constant 14 : index
    %72 = memref.load %arg1[%c14] : memref<98xf32, #tpu.memory_space<smem>>
    %c63 = arith.constant 63 : index
    %73 = memref.load %arg1[%c63] : memref<98xf32, #tpu.memory_space<smem>>
    %74 = vector.extract_strided_slice %34 {offsets = [0, 2, 0], sizes = [1, 16, 16], strides = [1, 1, 1]} : vector<1x22x16xf32> to vector<1x16x16xf32>
    %75 = vector.broadcast %72 : f32 to vector<1x16x16xf32>
    %76 = arith.mulf %75, %74 : vector<1x16x16xf32>
    %77 = vector.extract_strided_slice %41 {offsets = [0, 2, 0], sizes = [1, 16, 16], strides = [1, 1, 1]} : vector<1x22x16xf32> to vector<1x16x16xf32>
    %78 = vector.broadcast %73 : f32 to vector<1x16x16xf32>
    %79 = arith.mulf %78, %77 : vector<1x16x16xf32>
    %80 = arith.addf %76, %79 : vector<1x16x16xf32>
    %81 = arith.addf %50, %80 : vector<1x16x16xf32>
    %c21 = arith.constant 21 : index
    %82 = memref.load %arg1[%c21] : memref<98xf32, #tpu.memory_space<smem>>
    %c70 = arith.constant 70 : index
    %83 = memref.load %arg1[%c70] : memref<98xf32, #tpu.memory_space<smem>>
    %84 = vector.extract_strided_slice %34 {offsets = [0, 3, 0], sizes = [1, 16, 16], strides = [1, 1, 1]} : vector<1x22x16xf32> to vector<1x16x16xf32>
    %85 = vector.broadcast %82 : f32 to vector<1x16x16xf32>
    %86 = arith.mulf %85, %84 : vector<1x16x16xf32>
    %87 = vector.extract_strided_slice %41 {offsets = [0, 3, 0], sizes = [1, 16, 16], strides = [1, 1, 1]} : vector<1x22x16xf32> to vector<1x16x16xf32>
    %88 = vector.broadcast %83 : f32 to vector<1x16x16xf32>
    %89 = arith.mulf %88, %87 : vector<1x16x16xf32>
    %90 = arith.addf %86, %89 : vector<1x16x16xf32>
    %91 = arith.addf %51, %90 : vector<1x16x16xf32>
    %c28 = arith.constant 28 : index
    %92 = memref.load %arg1[%c28] : memref<98xf32, #tpu.memory_space<smem>>
    %c77 = arith.constant 77 : index
    %93 = memref.load %arg1[%c77] : memref<98xf32, #tpu.memory_space<smem>>
    %94 = vector.extract_strided_slice %34 {offsets = [0, 4, 0], sizes = [1, 16, 16], strides = [1, 1, 1]} : vector<1x22x16xf32> to vector<1x16x16xf32>
    %95 = vector.broadcast %92 : f32 to vector<1x16x16xf32>
    %96 = arith.mulf %95, %94 : vector<1x16x16xf32>
    %97 = vector.extract_strided_slice %41 {offsets = [0, 4, 0], sizes = [1, 16, 16], strides = [1, 1, 1]} : vector<1x22x16xf32> to vector<1x16x16xf32>
    %98 = vector.broadcast %93 : f32 to vector<1x16x16xf32>
    %99 = arith.mulf %98, %97 : vector<1x16x16xf32>
    %100 = arith.addf %96, %99 : vector<1x16x16xf32>
    %101 = arith.addf %61, %100 : vector<1x16x16xf32>
    %c35 = arith.constant 35 : index
    %102 = memref.load %arg1[%c35] : memref<98xf32, #tpu.memory_space<smem>>
    %c84 = arith.constant 84 : index
    %103 = memref.load %arg1[%c84] : memref<98xf32, #tpu.memory_space<smem>>
    %104 = vector.extract_strided_slice %34 {offsets = [0, 5, 0], sizes = [1, 16, 16], strides = [1, 1, 1]} : vector<1x22x16xf32> to vector<1x16x16xf32>
    %105 = vector.broadcast %102 : f32 to vector<1x16x16xf32>
    %106 = arith.mulf %105, %104 : vector<1x16x16xf32>
    %107 = vector.extract_strided_slice %41 {offsets = [0, 5, 0], sizes = [1, 16, 16], strides = [1, 1, 1]} : vector<1x22x16xf32> to vector<1x16x16xf32>
    %108 = vector.broadcast %103 : f32 to vector<1x16x16xf32>
    %109 = arith.mulf %108, %107 : vector<1x16x16xf32>
    %110 = arith.addf %106, %109 : vector<1x16x16xf32>
    %111 = arith.addf %71, %110 : vector<1x16x16xf32>
    %c42 = arith.constant 42 : index
    %112 = memref.load %arg1[%c42] : memref<98xf32, #tpu.memory_space<smem>>
    %c91 = arith.constant 91 : index
    %113 = memref.load %arg1[%c91] : memref<98xf32, #tpu.memory_space<smem>>
    %114 = vector.extract_strided_slice %34 {offsets = [0, 6, 0], sizes = [1, 16, 16], strides = [1, 1, 1]} : vector<1x22x16xf32> to vector<1x16x16xf32>
    %115 = vector.broadcast %112 : f32 to vector<1x16x16xf32>
    %116 = arith.mulf %115, %114 : vector<1x16x16xf32>
    %117 = vector.extract_strided_slice %41 {offsets = [0, 6, 0], sizes = [1, 16, 16], strides = [1, 1, 1]} : vector<1x22x16xf32> to vector<1x16x16xf32>
    %118 = vector.broadcast %113 : f32 to vector<1x16x16xf32>
    %119 = arith.mulf %118, %117 : vector<1x16x16xf32>
    %120 = arith.addf %116, %119 : vector<1x16x16xf32>
    %121 = arith.addf %81, %120 : vector<1x16x16xf32>
    %c1 = arith.constant 1 : index
    %122 = memref.load %arg1[%c1] : memref<98xf32, #tpu.memory_space<smem>>
    %c50 = arith.constant 50 : index
    %123 = memref.load %arg1[%c50] : memref<98xf32, #tpu.memory_space<smem>>
    %124 = vector.extract_strided_slice %35 {offsets = [0, 0, 0], sizes = [1, 16, 16], strides = [1, 1, 1]} : vector<1x22x16xf32> to vector<1x16x16xf32>
    %125 = vector.broadcast %122 : f32 to vector<1x16x16xf32>
    %126 = arith.mulf %125, %124 : vector<1x16x16xf32>
    %127 = vector.extract_strided_slice %42 {offsets = [0, 0, 0], sizes = [1, 16, 16], strides = [1, 1, 1]} : vector<1x22x16xf32> to vector<1x16x16xf32>
    %128 = vector.broadcast %123 : f32 to vector<1x16x16xf32>
    %129 = arith.mulf %128, %127 : vector<1x16x16xf32>
    %130 = arith.addf %126, %129 : vector<1x16x16xf32>
    %131 = arith.addf %91, %130 : vector<1x16x16xf32>
    %c8 = arith.constant 8 : index
    %132 = memref.load %arg1[%c8] : memref<98xf32, #tpu.memory_space<smem>>
    %c57 = arith.constant 57 : index
    %133 = memref.load %arg1[%c57] : memref<98xf32, #tpu.memory_space<smem>>
    %134 = vector.extract_strided_slice %35 {offsets = [0, 1, 0], sizes = [1, 16, 16], strides = [1, 1, 1]} : vector<1x22x16xf32> to vector<1x16x16xf32>
    %135 = vector.broadcast %132 : f32 to vector<1x16x16xf32>
    %136 = arith.mulf %135, %134 : vector<1x16x16xf32>
    %137 = vector.extract_strided_slice %42 {offsets = [0, 1, 0], sizes = [1, 16, 16], strides = [1, 1, 1]} : vector<1x22x16xf32> to vector<1x16x16xf32>
    %138 = vector.broadcast %133 : f32 to vector<1x16x16xf32>
    %139 = arith.mulf %138, %137 : vector<1x16x16xf32>
    %140 = arith.addf %136, %139 : vector<1x16x16xf32>
    %141 = arith.addf %101, %140 : vector<1x16x16xf32>
    %c15 = arith.constant 15 : index
    %142 = memref.load %arg1[%c15] : memref<98xf32, #tpu.memory_space<smem>>
    %c64 = arith.constant 64 : index
    %143 = memref.load %arg1[%c64] : memref<98xf32, #tpu.memory_space<smem>>
    %144 = vector.extract_strided_slice %35 {offsets = [0, 2, 0], sizes = [1, 16, 16], strides = [1, 1, 1]} : vector<1x22x16xf32> to vector<1x16x16xf32>
    %145 = vector.broadcast %142 : f32 to vector<1x16x16xf32>
    %146 = arith.mulf %145, %144 : vector<1x16x16xf32>
    %147 = vector.extract_strided_slice %42 {offsets = [0, 2, 0], sizes = [1, 16, 16], strides = [1, 1, 1]} : vector<1x22x16xf32> to vector<1x16x16xf32>
    %148 = vector.broadcast %143 : f32 to vector<1x16x16xf32>
    %149 = arith.mulf %148, %147 : vector<1x16x16xf32>
    %150 = arith.addf %146, %149 : vector<1x16x16xf32>
    %151 = arith.addf %111, %150 : vector<1x16x16xf32>
    %c22 = arith.constant 22 : index
    %152 = memref.load %arg1[%c22] : memref<98xf32, #tpu.memory_space<smem>>
    %c71 = arith.constant 71 : index
    %153 = memref.load %arg1[%c71] : memref<98xf32, #tpu.memory_space<smem>>
    %154 = vector.extract_strided_slice %35 {offsets = [0, 3, 0], sizes = [1, 16, 16], strides = [1, 1, 1]} : vector<1x22x16xf32> to vector<1x16x16xf32>
    %155 = vector.broadcast %152 : f32 to vector<1x16x16xf32>
    %156 = arith.mulf %155, %154 : vector<1x16x16xf32>
    %157 = vector.extract_strided_slice %42 {offsets = [0, 3, 0], sizes = [1, 16, 16], strides = [1, 1, 1]} : vector<1x22x16xf32> to vector<1x16x16xf32>
    %158 = vector.broadcast %153 : f32 to vector<1x16x16xf32>
    %159 = arith.mulf %158, %157 : vector<1x16x16xf32>
    %160 = arith.addf %156, %159 : vector<1x16x16xf32>
    %161 = arith.addf %121, %160 : vector<1x16x16xf32>
    %c29 = arith.constant 29 : index
    %162 = memref.load %arg1[%c29] : memref<98xf32, #tpu.memory_space<smem>>
    %c78 = arith.constant 78 : index
    %163 = memref.load %arg1[%c78] : memref<98xf32, #tpu.memory_space<smem>>
    %164 = vector.extract_strided_slice %35 {offsets = [0, 4, 0], sizes = [1, 16, 16], strides = [1, 1, 1]} : vector<1x22x16xf32> to vector<1x16x16xf32>
    %165 = vector.broadcast %162 : f32 to vector<1x16x16xf32>
    %166 = arith.mulf %165, %164 : vector<1x16x16xf32>
    %167 = vector.extract_strided_slice %42 {offsets = [0, 4, 0], sizes = [1, 16, 16], strides = [1, 1, 1]} : vector<1x22x16xf32> to vector<1x16x16xf32>
    %168 = vector.broadcast %163 : f32 to vector<1x16x16xf32>
    %169 = arith.mulf %168, %167 : vector<1x16x16xf32>
    %170 = arith.addf %166, %169 : vector<1x16x16xf32>
    %171 = arith.addf %131, %170 : vector<1x16x16xf32>
    %c36 = arith.constant 36 : index
    %172 = memref.load %arg1[%c36] : memref<98xf32, #tpu.memory_space<smem>>
    %c85 = arith.constant 85 : index
    %173 = memref.load %arg1[%c85] : memref<98xf32, #tpu.memory_space<smem>>
    %174 = vector.extract_strided_slice %35 {offsets = [0, 5, 0], sizes = [1, 16, 16], strides = [1, 1, 1]} : vector<1x22x16xf32> to vector<1x16x16xf32>
    %175 = vector.broadcast %172 : f32 to vector<1x16x16xf32>
    %176 = arith.mulf %175, %174 : vector<1x16x16xf32>
    %177 = vector.extract_strided_slice %42 {offsets = [0, 5, 0], sizes = [1, 16, 16], strides = [1, 1, 1]} : vector<1x22x16xf32> to vector<1x16x16xf32>
    %178 = vector.broadcast %173 : f32 to vector<1x16x16xf32>
    %179 = arith.mulf %178, %177 : vector<1x16x16xf32>
    %180 = arith.addf %176, %179 : vector<1x16x16xf32>
    %181 = arith.addf %141, %180 : vector<1x16x16xf32>
    %c43 = arith.constant 43 : index
    %182 = memref.load %arg1[%c43] : memref<98xf32, #tpu.memory_space<smem>>
    %c92 = arith.constant 92 : index
    %183 = memref.load %arg1[%c92] : memref<98xf32, #tpu.memory_space<smem>>
    %184 = vector.extract_strided_slice %35 {offsets = [0, 6, 0], sizes = [1, 16, 16], strides = [1, 1, 1]} : vector<1x22x16xf32> to vector<1x16x16xf32>
    %185 = vector.broadcast %182 : f32 to vector<1x16x16xf32>
    %186 = arith.mulf %185, %184 : vector<1x16x16xf32>
    %187 = vector.extract_strided_slice %42 {offsets = [0, 6, 0], sizes = [1, 16, 16], strides = [1, 1, 1]} : vector<1x22x16xf32> to vector<1x16x16xf32>
    %188 = vector.broadcast %183 : f32 to vector<1x16x16xf32>
    %189 = arith.mulf %188, %187 : vector<1x16x16xf32>
    %190 = arith.addf %186, %189 : vector<1x16x16xf32>
    %191 = arith.addf %151, %190 : vector<1x16x16xf32>
    %c2 = arith.constant 2 : index
    %192 = memref.load %arg1[%c2] : memref<98xf32, #tpu.memory_space<smem>>
    %c51 = arith.constant 51 : index
    %193 = memref.load %arg1[%c51] : memref<98xf32, #tpu.memory_space<smem>>
    %194 = vector.extract_strided_slice %36 {offsets = [0, 0, 0], sizes = [1, 16, 16], strides = [1, 1, 1]} : vector<1x22x16xf32> to vector<1x16x16xf32>
    %195 = vector.broadcast %192 : f32 to vector<1x16x16xf32>
    %196 = arith.mulf %195, %194 : vector<1x16x16xf32>
    %197 = vector.extract_strided_slice %43 {offsets = [0, 0, 0], sizes = [1, 16, 16], strides = [1, 1, 1]} : vector<1x22x16xf32> to vector<1x16x16xf32>
    %198 = vector.broadcast %193 : f32 to vector<1x16x16xf32>
    %199 = arith.mulf %198, %197 : vector<1x16x16xf32>
    %200 = arith.addf %196, %199 : vector<1x16x16xf32>
    %201 = arith.addf %161, %200 : vector<1x16x16xf32>
    %c9 = arith.constant 9 : index
    %202 = memref.load %arg1[%c9] : memref<98xf32, #tpu.memory_space<smem>>
    %c58 = arith.constant 58 : index
    %203 = memref.load %arg1[%c58] : memref<98xf32, #tpu.memory_space<smem>>
    %204 = vector.extract_strided_slice %36 {offsets = [0, 1, 0], sizes = [1, 16, 16], strides = [1, 1, 1]} : vector<1x22x16xf32> to vector<1x16x16xf32>
    %205 = vector.broadcast %202 : f32 to vector<1x16x16xf32>
    %206 = arith.mulf %205, %204 : vector<1x16x16xf32>
    %207 = vector.extract_strided_slice %43 {offsets = [0, 1, 0], sizes = [1, 16, 16], strides = [1, 1, 1]} : vector<1x22x16xf32> to vector<1x16x16xf32>
    %208 = vector.broadcast %203 : f32 to vector<1x16x16xf32>
    %209 = arith.mulf %208, %207 : vector<1x16x16xf32>
    %210 = arith.addf %206, %209 : vector<1x16x16xf32>
    %211 = arith.addf %171, %210 : vector<1x16x16xf32>
    %c16 = arith.constant 16 : index
    %212 = memref.load %arg1[%c16] : memref<98xf32, #tpu.memory_space<smem>>
    %c65 = arith.constant 65 : index
    %213 = memref.load %arg1[%c65] : memref<98xf32, #tpu.memory_space<smem>>
    %214 = vector.extract_strided_slice %36 {offsets = [0, 2, 0], sizes = [1, 16, 16], strides = [1, 1, 1]} : vector<1x22x16xf32> to vector<1x16x16xf32>
    %215 = vector.broadcast %212 : f32 to vector<1x16x16xf32>
    %216 = arith.mulf %215, %214 : vector<1x16x16xf32>
    %217 = vector.extract_strided_slice %43 {offsets = [0, 2, 0], sizes = [1, 16, 16], strides = [1, 1, 1]} : vector<1x22x16xf32> to vector<1x16x16xf32>
    %218 = vector.broadcast %213 : f32 to vector<1x16x16xf32>
    %219 = arith.mulf %218, %217 : vector<1x16x16xf32>
    %220 = arith.addf %216, %219 : vector<1x16x16xf32>
    %221 = arith.addf %181, %220 : vector<1x16x16xf32>
    %c23 = arith.constant 23 : index
    %222 = memref.load %arg1[%c23] : memref<98xf32, #tpu.memory_space<smem>>
    %c72 = arith.constant 72 : index
    %223 = memref.load %arg1[%c72] : memref<98xf32, #tpu.memory_space<smem>>
    %224 = vector.extract_strided_slice %36 {offsets = [0, 3, 0], sizes = [1, 16, 16], strides = [1, 1, 1]} : vector<1x22x16xf32> to vector<1x16x16xf32>
    %225 = vector.broadcast %222 : f32 to vector<1x16x16xf32>
    %226 = arith.mulf %225, %224 : vector<1x16x16xf32>
    %227 = vector.extract_strided_slice %43 {offsets = [0, 3, 0], sizes = [1, 16, 16], strides = [1, 1, 1]} : vector<1x22x16xf32> to vector<1x16x16xf32>
    %228 = vector.broadcast %223 : f32 to vector<1x16x16xf32>
    %229 = arith.mulf %228, %227 : vector<1x16x16xf32>
    %230 = arith.addf %226, %229 : vector<1x16x16xf32>
    %231 = arith.addf %191, %230 : vector<1x16x16xf32>
    %c30 = arith.constant 30 : index
    %232 = memref.load %arg1[%c30] : memref<98xf32, #tpu.memory_space<smem>>
    %c79 = arith.constant 79 : index
    %233 = memref.load %arg1[%c79] : memref<98xf32, #tpu.memory_space<smem>>
    %234 = vector.extract_strided_slice %36 {offsets = [0, 4, 0], sizes = [1, 16, 16], strides = [1, 1, 1]} : vector<1x22x16xf32> to vector<1x16x16xf32>
    %235 = vector.broadcast %232 : f32 to vector<1x16x16xf32>
    %236 = arith.mulf %235, %234 : vector<1x16x16xf32>
    %237 = vector.extract_strided_slice %43 {offsets = [0, 4, 0], sizes = [1, 16, 16], strides = [1, 1, 1]} : vector<1x22x16xf32> to vector<1x16x16xf32>
    %238 = vector.broadcast %233 : f32 to vector<1x16x16xf32>
    %239 = arith.mulf %238, %237 : vector<1x16x16xf32>
    %240 = arith.addf %236, %239 : vector<1x16x16xf32>
    %241 = arith.addf %201, %240 : vector<1x16x16xf32>
    %c37 = arith.constant 37 : index
    %242 = memref.load %arg1[%c37] : memref<98xf32, #tpu.memory_space<smem>>
    %c86 = arith.constant 86 : index
    %243 = memref.load %arg1[%c86] : memref<98xf32, #tpu.memory_space<smem>>
    %244 = vector.extract_strided_slice %36 {offsets = [0, 5, 0], sizes = [1, 16, 16], strides = [1, 1, 1]} : vector<1x22x16xf32> to vector<1x16x16xf32>
    %245 = vector.broadcast %242 : f32 to vector<1x16x16xf32>
    %246 = arith.mulf %245, %244 : vector<1x16x16xf32>
    %247 = vector.extract_strided_slice %43 {offsets = [0, 5, 0], sizes = [1, 16, 16], strides = [1, 1, 1]} : vector<1x22x16xf32> to vector<1x16x16xf32>
    %248 = vector.broadcast %243 : f32 to vector<1x16x16xf32>
    %249 = arith.mulf %248, %247 : vector<1x16x16xf32>
    %250 = arith.addf %246, %249 : vector<1x16x16xf32>
    %251 = arith.addf %211, %250 : vector<1x16x16xf32>
    %c44 = arith.constant 44 : index
    %252 = memref.load %arg1[%c44] : memref<98xf32, #tpu.memory_space<smem>>
    %c93 = arith.constant 93 : index
    %253 = memref.load %arg1[%c93] : memref<98xf32, #tpu.memory_space<smem>>
    %254 = vector.extract_strided_slice %36 {offsets = [0, 6, 0], sizes = [1, 16, 16], strides = [1, 1, 1]} : vector<1x22x16xf32> to vector<1x16x16xf32>
    %255 = vector.broadcast %252 : f32 to vector<1x16x16xf32>
    %256 = arith.mulf %255, %254 : vector<1x16x16xf32>
    %257 = vector.extract_strided_slice %43 {offsets = [0, 6, 0], sizes = [1, 16, 16], strides = [1, 1, 1]} : vector<1x22x16xf32> to vector<1x16x16xf32>
    %258 = vector.broadcast %253 : f32 to vector<1x16x16xf32>
    %259 = arith.mulf %258, %257 : vector<1x16x16xf32>
    %260 = arith.addf %256, %259 : vector<1x16x16xf32>
    %261 = arith.addf %221, %260 : vector<1x16x16xf32>
    %c3 = arith.constant 3 : index
    %262 = memref.load %arg1[%c3] : memref<98xf32, #tpu.memory_space<smem>>
    %c52 = arith.constant 52 : index
    %263 = memref.load %arg1[%c52] : memref<98xf32, #tpu.memory_space<smem>>
    %264 = vector.extract_strided_slice %37 {offsets = [0, 0, 0], sizes = [1, 16, 16], strides = [1, 1, 1]} : vector<1x22x16xf32> to vector<1x16x16xf32>
    %265 = vector.broadcast %262 : f32 to vector<1x16x16xf32>
    %266 = arith.mulf %265, %264 : vector<1x16x16xf32>
    %267 = vector.extract_strided_slice %44 {offsets = [0, 0, 0], sizes = [1, 16, 16], strides = [1, 1, 1]} : vector<1x22x16xf32> to vector<1x16x16xf32>
    %268 = vector.broadcast %263 : f32 to vector<1x16x16xf32>
    %269 = arith.mulf %268, %267 : vector<1x16x16xf32>
    %270 = arith.addf %266, %269 : vector<1x16x16xf32>
    %271 = arith.addf %231, %270 : vector<1x16x16xf32>
    %c10 = arith.constant 10 : index
    %272 = memref.load %arg1[%c10] : memref<98xf32, #tpu.memory_space<smem>>
    %c59 = arith.constant 59 : index
    %273 = memref.load %arg1[%c59] : memref<98xf32, #tpu.memory_space<smem>>
    %274 = vector.extract_strided_slice %37 {offsets = [0, 1, 0], sizes = [1, 16, 16], strides = [1, 1, 1]} : vector<1x22x16xf32> to vector<1x16x16xf32>
    %275 = vector.broadcast %272 : f32 to vector<1x16x16xf32>
    %276 = arith.mulf %275, %274 : vector<1x16x16xf32>
    %277 = vector.extract_strided_slice %44 {offsets = [0, 1, 0], sizes = [1, 16, 16], strides = [1, 1, 1]} : vector<1x22x16xf32> to vector<1x16x16xf32>
    %278 = vector.broadcast %273 : f32 to vector<1x16x16xf32>
    %279 = arith.mulf %278, %277 : vector<1x16x16xf32>
    %280 = arith.addf %276, %279 : vector<1x16x16xf32>
    %281 = arith.addf %241, %280 : vector<1x16x16xf32>
    %c17 = arith.constant 17 : index
    %282 = memref.load %arg1[%c17] : memref<98xf32, #tpu.memory_space<smem>>
    %c66 = arith.constant 66 : index
    %283 = memref.load %arg1[%c66] : memref<98xf32, #tpu.memory_space<smem>>
    %284 = vector.extract_strided_slice %37 {offsets = [0, 2, 0], sizes = [1, 16, 16], strides = [1, 1, 1]} : vector<1x22x16xf32> to vector<1x16x16xf32>
    %285 = vector.broadcast %282 : f32 to vector<1x16x16xf32>
    %286 = arith.mulf %285, %284 : vector<1x16x16xf32>
    %287 = vector.extract_strided_slice %44 {offsets = [0, 2, 0], sizes = [1, 16, 16], strides = [1, 1, 1]} : vector<1x22x16xf32> to vector<1x16x16xf32>
    %288 = vector.broadcast %283 : f32 to vector<1x16x16xf32>
    %289 = arith.mulf %288, %287 : vector<1x16x16xf32>
    %290 = arith.addf %286, %289 : vector<1x16x16xf32>
    %291 = arith.addf %251, %290 : vector<1x16x16xf32>
    %c24 = arith.constant 24 : index
    %292 = memref.load %arg1[%c24] : memref<98xf32, #tpu.memory_space<smem>>
    %c73 = arith.constant 73 : index
    %293 = memref.load %arg1[%c73] : memref<98xf32, #tpu.memory_space<smem>>
    %294 = vector.extract_strided_slice %37 {offsets = [0, 3, 0], sizes = [1, 16, 16], strides = [1, 1, 1]} : vector<1x22x16xf32> to vector<1x16x16xf32>
    %295 = vector.broadcast %292 : f32 to vector<1x16x16xf32>
    %296 = arith.mulf %295, %294 : vector<1x16x16xf32>
    %297 = vector.extract_strided_slice %44 {offsets = [0, 3, 0], sizes = [1, 16, 16], strides = [1, 1, 1]} : vector<1x22x16xf32> to vector<1x16x16xf32>
    %298 = vector.broadcast %293 : f32 to vector<1x16x16xf32>
    %299 = arith.mulf %298, %297 : vector<1x16x16xf32>
    %300 = arith.addf %296, %299 : vector<1x16x16xf32>
    %301 = arith.addf %261, %300 : vector<1x16x16xf32>
    %c31 = arith.constant 31 : index
    %302 = memref.load %arg1[%c31] : memref<98xf32, #tpu.memory_space<smem>>
    %c80 = arith.constant 80 : index
    %303 = memref.load %arg1[%c80] : memref<98xf32, #tpu.memory_space<smem>>
    %304 = vector.extract_strided_slice %37 {offsets = [0, 4, 0], sizes = [1, 16, 16], strides = [1, 1, 1]} : vector<1x22x16xf32> to vector<1x16x16xf32>
    %305 = vector.broadcast %302 : f32 to vector<1x16x16xf32>
    %306 = arith.mulf %305, %304 : vector<1x16x16xf32>
    %307 = vector.extract_strided_slice %44 {offsets = [0, 4, 0], sizes = [1, 16, 16], strides = [1, 1, 1]} : vector<1x22x16xf32> to vector<1x16x16xf32>
    %308 = vector.broadcast %303 : f32 to vector<1x16x16xf32>
    %309 = arith.mulf %308, %307 : vector<1x16x16xf32>
    %310 = arith.addf %306, %309 : vector<1x16x16xf32>
    %311 = arith.addf %271, %310 : vector<1x16x16xf32>
    %c38 = arith.constant 38 : index
    %312 = memref.load %arg1[%c38] : memref<98xf32, #tpu.memory_space<smem>>
    %c87 = arith.constant 87 : index
    %313 = memref.load %arg1[%c87] : memref<98xf32, #tpu.memory_space<smem>>
    %314 = vector.extract_strided_slice %37 {offsets = [0, 5, 0], sizes = [1, 16, 16], strides = [1, 1, 1]} : vector<1x22x16xf32> to vector<1x16x16xf32>
    %315 = vector.broadcast %312 : f32 to vector<1x16x16xf32>
    %316 = arith.mulf %315, %314 : vector<1x16x16xf32>
    %317 = vector.extract_strided_slice %44 {offsets = [0, 5, 0], sizes = [1, 16, 16], strides = [1, 1, 1]} : vector<1x22x16xf32> to vector<1x16x16xf32>
    %318 = vector.broadcast %313 : f32 to vector<1x16x16xf32>
    %319 = arith.mulf %318, %317 : vector<1x16x16xf32>
    %320 = arith.addf %316, %319 : vector<1x16x16xf32>
    %321 = arith.addf %281, %320 : vector<1x16x16xf32>
    %c45 = arith.constant 45 : index
    %322 = memref.load %arg1[%c45] : memref<98xf32, #tpu.memory_space<smem>>
    %c94 = arith.constant 94 : index
    %323 = memref.load %arg1[%c94] : memref<98xf32, #tpu.memory_space<smem>>
    %324 = vector.extract_strided_slice %37 {offsets = [0, 6, 0], sizes = [1, 16, 16], strides = [1, 1, 1]} : vector<1x22x16xf32> to vector<1x16x16xf32>
    %325 = vector.broadcast %322 : f32 to vector<1x16x16xf32>
    %326 = arith.mulf %325, %324 : vector<1x16x16xf32>
    %327 = vector.extract_strided_slice %44 {offsets = [0, 6, 0], sizes = [1, 16, 16], strides = [1, 1, 1]} : vector<1x22x16xf32> to vector<1x16x16xf32>
    %328 = vector.broadcast %323 : f32 to vector<1x16x16xf32>
    %329 = arith.mulf %328, %327 : vector<1x16x16xf32>
    %330 = arith.addf %326, %329 : vector<1x16x16xf32>
    %331 = arith.addf %291, %330 : vector<1x16x16xf32>
    %c4 = arith.constant 4 : index
    %332 = memref.load %arg1[%c4] : memref<98xf32, #tpu.memory_space<smem>>
    %c53 = arith.constant 53 : index
    %333 = memref.load %arg1[%c53] : memref<98xf32, #tpu.memory_space<smem>>
    %334 = vector.extract_strided_slice %38 {offsets = [0, 0, 0], sizes = [1, 16, 16], strides = [1, 1, 1]} : vector<1x22x16xf32> to vector<1x16x16xf32>
    %335 = vector.broadcast %332 : f32 to vector<1x16x16xf32>
    %336 = arith.mulf %335, %334 : vector<1x16x16xf32>
    %337 = vector.extract_strided_slice %45 {offsets = [0, 0, 0], sizes = [1, 16, 16], strides = [1, 1, 1]} : vector<1x22x16xf32> to vector<1x16x16xf32>
    %338 = vector.broadcast %333 : f32 to vector<1x16x16xf32>
    %339 = arith.mulf %338, %337 : vector<1x16x16xf32>
    %340 = arith.addf %336, %339 : vector<1x16x16xf32>
    %341 = arith.addf %301, %340 : vector<1x16x16xf32>
    %c11 = arith.constant 11 : index
    %342 = memref.load %arg1[%c11] : memref<98xf32, #tpu.memory_space<smem>>
    %c60 = arith.constant 60 : index
    %343 = memref.load %arg1[%c60] : memref<98xf32, #tpu.memory_space<smem>>
    %344 = vector.extract_strided_slice %38 {offsets = [0, 1, 0], sizes = [1, 16, 16], strides = [1, 1, 1]} : vector<1x22x16xf32> to vector<1x16x16xf32>
    %345 = vector.broadcast %342 : f32 to vector<1x16x16xf32>
    %346 = arith.mulf %345, %344 : vector<1x16x16xf32>
    %347 = vector.extract_strided_slice %45 {offsets = [0, 1, 0], sizes = [1, 16, 16], strides = [1, 1, 1]} : vector<1x22x16xf32> to vector<1x16x16xf32>
    %348 = vector.broadcast %343 : f32 to vector<1x16x16xf32>
    %349 = arith.mulf %348, %347 : vector<1x16x16xf32>
    %350 = arith.addf %346, %349 : vector<1x16x16xf32>
    %351 = arith.addf %311, %350 : vector<1x16x16xf32>
    %c18 = arith.constant 18 : index
    %352 = memref.load %arg1[%c18] : memref<98xf32, #tpu.memory_space<smem>>
    %c67 = arith.constant 67 : index
    %353 = memref.load %arg1[%c67] : memref<98xf32, #tpu.memory_space<smem>>
    %354 = vector.extract_strided_slice %38 {offsets = [0, 2, 0], sizes = [1, 16, 16], strides = [1, 1, 1]} : vector<1x22x16xf32> to vector<1x16x16xf32>
    %355 = vector.broadcast %352 : f32 to vector<1x16x16xf32>
    %356 = arith.mulf %355, %354 : vector<1x16x16xf32>
    %357 = vector.extract_strided_slice %45 {offsets = [0, 2, 0], sizes = [1, 16, 16], strides = [1, 1, 1]} : vector<1x22x16xf32> to vector<1x16x16xf32>
    %358 = vector.broadcast %353 : f32 to vector<1x16x16xf32>
    %359 = arith.mulf %358, %357 : vector<1x16x16xf32>
    %360 = arith.addf %356, %359 : vector<1x16x16xf32>
    %361 = arith.addf %321, %360 : vector<1x16x16xf32>
    %c25 = arith.constant 25 : index
    %362 = memref.load %arg1[%c25] : memref<98xf32, #tpu.memory_space<smem>>
    %c74 = arith.constant 74 : index
    %363 = memref.load %arg1[%c74] : memref<98xf32, #tpu.memory_space<smem>>
    %364 = vector.extract_strided_slice %38 {offsets = [0, 3, 0], sizes = [1, 16, 16], strides = [1, 1, 1]} : vector<1x22x16xf32> to vector<1x16x16xf32>
    %365 = vector.broadcast %362 : f32 to vector<1x16x16xf32>
    %366 = arith.mulf %365, %364 : vector<1x16x16xf32>
    %367 = vector.extract_strided_slice %45 {offsets = [0, 3, 0], sizes = [1, 16, 16], strides = [1, 1, 1]} : vector<1x22x16xf32> to vector<1x16x16xf32>
    %368 = vector.broadcast %363 : f32 to vector<1x16x16xf32>
    %369 = arith.mulf %368, %367 : vector<1x16x16xf32>
    %370 = arith.addf %366, %369 : vector<1x16x16xf32>
    %371 = arith.addf %331, %370 : vector<1x16x16xf32>
    %c32 = arith.constant 32 : index
    %372 = memref.load %arg1[%c32] : memref<98xf32, #tpu.memory_space<smem>>
    %c81 = arith.constant 81 : index
    %373 = memref.load %arg1[%c81] : memref<98xf32, #tpu.memory_space<smem>>
    %374 = vector.extract_strided_slice %38 {offsets = [0, 4, 0], sizes = [1, 16, 16], strides = [1, 1, 1]} : vector<1x22x16xf32> to vector<1x16x16xf32>
    %375 = vector.broadcast %372 : f32 to vector<1x16x16xf32>
    %376 = arith.mulf %375, %374 : vector<1x16x16xf32>
    %377 = vector.extract_strided_slice %45 {offsets = [0, 4, 0], sizes = [1, 16, 16], strides = [1, 1, 1]} : vector<1x22x16xf32> to vector<1x16x16xf32>
    %378 = vector.broadcast %373 : f32 to vector<1x16x16xf32>
    %379 = arith.mulf %378, %377 : vector<1x16x16xf32>
    %380 = arith.addf %376, %379 : vector<1x16x16xf32>
    %381 = arith.addf %341, %380 : vector<1x16x16xf32>
    %c39 = arith.constant 39 : index
    %382 = memref.load %arg1[%c39] : memref<98xf32, #tpu.memory_space<smem>>
    %c88 = arith.constant 88 : index
    %383 = memref.load %arg1[%c88] : memref<98xf32, #tpu.memory_space<smem>>
    %384 = vector.extract_strided_slice %38 {offsets = [0, 5, 0], sizes = [1, 16, 16], strides = [1, 1, 1]} : vector<1x22x16xf32> to vector<1x16x16xf32>
    %385 = vector.broadcast %382 : f32 to vector<1x16x16xf32>
    %386 = arith.mulf %385, %384 : vector<1x16x16xf32>
    %387 = vector.extract_strided_slice %45 {offsets = [0, 5, 0], sizes = [1, 16, 16], strides = [1, 1, 1]} : vector<1x22x16xf32> to vector<1x16x16xf32>
    %388 = vector.broadcast %383 : f32 to vector<1x16x16xf32>
    %389 = arith.mulf %388, %387 : vector<1x16x16xf32>
    %390 = arith.addf %386, %389 : vector<1x16x16xf32>
    %391 = arith.addf %351, %390 : vector<1x16x16xf32>
    %c46 = arith.constant 46 : index
    %392 = memref.load %arg1[%c46] : memref<98xf32, #tpu.memory_space<smem>>
    %c95 = arith.constant 95 : index
    %393 = memref.load %arg1[%c95] : memref<98xf32, #tpu.memory_space<smem>>
    %394 = vector.extract_strided_slice %38 {offsets = [0, 6, 0], sizes = [1, 16, 16], strides = [1, 1, 1]} : vector<1x22x16xf32> to vector<1x16x16xf32>
    %395 = vector.broadcast %392 : f32 to vector<1x16x16xf32>
    %396 = arith.mulf %395, %394 : vector<1x16x16xf32>
    %397 = vector.extract_strided_slice %45 {offsets = [0, 6, 0], sizes = [1, 16, 16], strides = [1, 1, 1]} : vector<1x22x16xf32> to vector<1x16x16xf32>
    %398 = vector.broadcast %393 : f32 to vector<1x16x16xf32>
    %399 = arith.mulf %398, %397 : vector<1x16x16xf32>
    %400 = arith.addf %396, %399 : vector<1x16x16xf32>
    %401 = arith.addf %361, %400 : vector<1x16x16xf32>
    %c5 = arith.constant 5 : index
    %402 = memref.load %arg1[%c5] : memref<98xf32, #tpu.memory_space<smem>>
    %c54 = arith.constant 54 : index
    %403 = memref.load %arg1[%c54] : memref<98xf32, #tpu.memory_space<smem>>
    %404 = vector.extract_strided_slice %39 {offsets = [0, 0, 0], sizes = [1, 16, 16], strides = [1, 1, 1]} : vector<1x22x16xf32> to vector<1x16x16xf32>
    %405 = vector.broadcast %402 : f32 to vector<1x16x16xf32>
    %406 = arith.mulf %405, %404 : vector<1x16x16xf32>
    %407 = vector.extract_strided_slice %46 {offsets = [0, 0, 0], sizes = [1, 16, 16], strides = [1, 1, 1]} : vector<1x22x16xf32> to vector<1x16x16xf32>
    %408 = vector.broadcast %403 : f32 to vector<1x16x16xf32>
    %409 = arith.mulf %408, %407 : vector<1x16x16xf32>
    %410 = arith.addf %406, %409 : vector<1x16x16xf32>
    %411 = arith.addf %371, %410 : vector<1x16x16xf32>
    %c12 = arith.constant 12 : index
    %412 = memref.load %arg1[%c12] : memref<98xf32, #tpu.memory_space<smem>>
    %c61 = arith.constant 61 : index
    %413 = memref.load %arg1[%c61] : memref<98xf32, #tpu.memory_space<smem>>
    %414 = vector.extract_strided_slice %39 {offsets = [0, 1, 0], sizes = [1, 16, 16], strides = [1, 1, 1]} : vector<1x22x16xf32> to vector<1x16x16xf32>
    %415 = vector.broadcast %412 : f32 to vector<1x16x16xf32>
    %416 = arith.mulf %415, %414 : vector<1x16x16xf32>
    %417 = vector.extract_strided_slice %46 {offsets = [0, 1, 0], sizes = [1, 16, 16], strides = [1, 1, 1]} : vector<1x22x16xf32> to vector<1x16x16xf32>
    %418 = vector.broadcast %413 : f32 to vector<1x16x16xf32>
    %419 = arith.mulf %418, %417 : vector<1x16x16xf32>
    %420 = arith.addf %416, %419 : vector<1x16x16xf32>
    %421 = arith.addf %381, %420 : vector<1x16x16xf32>
    %c19 = arith.constant 19 : index
    %422 = memref.load %arg1[%c19] : memref<98xf32, #tpu.memory_space<smem>>
    %c68 = arith.constant 68 : index
    %423 = memref.load %arg1[%c68] : memref<98xf32, #tpu.memory_space<smem>>
    %424 = vector.extract_strided_slice %39 {offsets = [0, 2, 0], sizes = [1, 16, 16], strides = [1, 1, 1]} : vector<1x22x16xf32> to vector<1x16x16xf32>
    %425 = vector.broadcast %422 : f32 to vector<1x16x16xf32>
    %426 = arith.mulf %425, %424 : vector<1x16x16xf32>
    %427 = vector.extract_strided_slice %46 {offsets = [0, 2, 0], sizes = [1, 16, 16], strides = [1, 1, 1]} : vector<1x22x16xf32> to vector<1x16x16xf32>
    %428 = vector.broadcast %423 : f32 to vector<1x16x16xf32>
    %429 = arith.mulf %428, %427 : vector<1x16x16xf32>
    %430 = arith.addf %426, %429 : vector<1x16x16xf32>
    %431 = arith.addf %391, %430 : vector<1x16x16xf32>
    %c26 = arith.constant 26 : index
    %432 = memref.load %arg1[%c26] : memref<98xf32, #tpu.memory_space<smem>>
    %c75 = arith.constant 75 : index
    %433 = memref.load %arg1[%c75] : memref<98xf32, #tpu.memory_space<smem>>
    %434 = vector.extract_strided_slice %39 {offsets = [0, 3, 0], sizes = [1, 16, 16], strides = [1, 1, 1]} : vector<1x22x16xf32> to vector<1x16x16xf32>
    %435 = vector.broadcast %432 : f32 to vector<1x16x16xf32>
    %436 = arith.mulf %435, %434 : vector<1x16x16xf32>
    %437 = vector.extract_strided_slice %46 {offsets = [0, 3, 0], sizes = [1, 16, 16], strides = [1, 1, 1]} : vector<1x22x16xf32> to vector<1x16x16xf32>
    %438 = vector.broadcast %433 : f32 to vector<1x16x16xf32>
    %439 = arith.mulf %438, %437 : vector<1x16x16xf32>
    %440 = arith.addf %436, %439 : vector<1x16x16xf32>
    %441 = arith.addf %401, %440 : vector<1x16x16xf32>
    %c33 = arith.constant 33 : index
    %442 = memref.load %arg1[%c33] : memref<98xf32, #tpu.memory_space<smem>>
    %c82 = arith.constant 82 : index
    %443 = memref.load %arg1[%c82] : memref<98xf32, #tpu.memory_space<smem>>
    %444 = vector.extract_strided_slice %39 {offsets = [0, 4, 0], sizes = [1, 16, 16], strides = [1, 1, 1]} : vector<1x22x16xf32> to vector<1x16x16xf32>
    %445 = vector.broadcast %442 : f32 to vector<1x16x16xf32>
    %446 = arith.mulf %445, %444 : vector<1x16x16xf32>
    %447 = vector.extract_strided_slice %46 {offsets = [0, 4, 0], sizes = [1, 16, 16], strides = [1, 1, 1]} : vector<1x22x16xf32> to vector<1x16x16xf32>
    %448 = vector.broadcast %443 : f32 to vector<1x16x16xf32>
    %449 = arith.mulf %448, %447 : vector<1x16x16xf32>
    %450 = arith.addf %446, %449 : vector<1x16x16xf32>
    %451 = arith.addf %411, %450 : vector<1x16x16xf32>
    %c40 = arith.constant 40 : index
    %452 = memref.load %arg1[%c40] : memref<98xf32, #tpu.memory_space<smem>>
    %c89 = arith.constant 89 : index
    %453 = memref.load %arg1[%c89] : memref<98xf32, #tpu.memory_space<smem>>
    %454 = vector.extract_strided_slice %39 {offsets = [0, 5, 0], sizes = [1, 16, 16], strides = [1, 1, 1]} : vector<1x22x16xf32> to vector<1x16x16xf32>
    %455 = vector.broadcast %452 : f32 to vector<1x16x16xf32>
    %456 = arith.mulf %455, %454 : vector<1x16x16xf32>
    %457 = vector.extract_strided_slice %46 {offsets = [0, 5, 0], sizes = [1, 16, 16], strides = [1, 1, 1]} : vector<1x22x16xf32> to vector<1x16x16xf32>
    %458 = vector.broadcast %453 : f32 to vector<1x16x16xf32>
    %459 = arith.mulf %458, %457 : vector<1x16x16xf32>
    %460 = arith.addf %456, %459 : vector<1x16x16xf32>
    %461 = arith.addf %421, %460 : vector<1x16x16xf32>
    %c47 = arith.constant 47 : index
    %462 = memref.load %arg1[%c47] : memref<98xf32, #tpu.memory_space<smem>>
    %c96 = arith.constant 96 : index
    %463 = memref.load %arg1[%c96] : memref<98xf32, #tpu.memory_space<smem>>
    %464 = vector.extract_strided_slice %39 {offsets = [0, 6, 0], sizes = [1, 16, 16], strides = [1, 1, 1]} : vector<1x22x16xf32> to vector<1x16x16xf32>
    %465 = vector.broadcast %462 : f32 to vector<1x16x16xf32>
    %466 = arith.mulf %465, %464 : vector<1x16x16xf32>
    %467 = vector.extract_strided_slice %46 {offsets = [0, 6, 0], sizes = [1, 16, 16], strides = [1, 1, 1]} : vector<1x22x16xf32> to vector<1x16x16xf32>
    %468 = vector.broadcast %463 : f32 to vector<1x16x16xf32>
    %469 = arith.mulf %468, %467 : vector<1x16x16xf32>
    %470 = arith.addf %466, %469 : vector<1x16x16xf32>
    %471 = arith.addf %431, %470 : vector<1x16x16xf32>
    %c6 = arith.constant 6 : index
    %472 = memref.load %arg1[%c6] : memref<98xf32, #tpu.memory_space<smem>>
    %c55 = arith.constant 55 : index
    %473 = memref.load %arg1[%c55] : memref<98xf32, #tpu.memory_space<smem>>
    %474 = vector.extract_strided_slice %40 {offsets = [0, 0, 0], sizes = [1, 16, 16], strides = [1, 1, 1]} : vector<1x22x16xf32> to vector<1x16x16xf32>
    %475 = vector.broadcast %472 : f32 to vector<1x16x16xf32>
    %476 = arith.mulf %475, %474 : vector<1x16x16xf32>
    %477 = vector.extract_strided_slice %47 {offsets = [0, 0, 0], sizes = [1, 16, 16], strides = [1, 1, 1]} : vector<1x22x16xf32> to vector<1x16x16xf32>
    %478 = vector.broadcast %473 : f32 to vector<1x16x16xf32>
    %479 = arith.mulf %478, %477 : vector<1x16x16xf32>
    %480 = arith.addf %476, %479 : vector<1x16x16xf32>
    %481 = arith.addf %441, %480 : vector<1x16x16xf32>
    %c13 = arith.constant 13 : index
    %482 = memref.load %arg1[%c13] : memref<98xf32, #tpu.memory_space<smem>>
    %c62 = arith.constant 62 : index
    %483 = memref.load %arg1[%c62] : memref<98xf32, #tpu.memory_space<smem>>
    %484 = vector.extract_strided_slice %40 {offsets = [0, 1, 0], sizes = [1, 16, 16], strides = [1, 1, 1]} : vector<1x22x16xf32> to vector<1x16x16xf32>
    %485 = vector.broadcast %482 : f32 to vector<1x16x16xf32>
    %486 = arith.mulf %485, %484 : vector<1x16x16xf32>
    %487 = vector.extract_strided_slice %47 {offsets = [0, 1, 0], sizes = [1, 16, 16], strides = [1, 1, 1]} : vector<1x22x16xf32> to vector<1x16x16xf32>
    %488 = vector.broadcast %483 : f32 to vector<1x16x16xf32>
    %489 = arith.mulf %488, %487 : vector<1x16x16xf32>
    %490 = arith.addf %486, %489 : vector<1x16x16xf32>
    %491 = arith.addf %451, %490 : vector<1x16x16xf32>
    %c20 = arith.constant 20 : index
    %492 = memref.load %arg1[%c20] : memref<98xf32, #tpu.memory_space<smem>>
    %c69 = arith.constant 69 : index
    %493 = memref.load %arg1[%c69] : memref<98xf32, #tpu.memory_space<smem>>
    %494 = vector.extract_strided_slice %40 {offsets = [0, 2, 0], sizes = [1, 16, 16], strides = [1, 1, 1]} : vector<1x22x16xf32> to vector<1x16x16xf32>
    %495 = vector.broadcast %492 : f32 to vector<1x16x16xf32>
    %496 = arith.mulf %495, %494 : vector<1x16x16xf32>
    %497 = vector.extract_strided_slice %47 {offsets = [0, 2, 0], sizes = [1, 16, 16], strides = [1, 1, 1]} : vector<1x22x16xf32> to vector<1x16x16xf32>
    %498 = vector.broadcast %493 : f32 to vector<1x16x16xf32>
    %499 = arith.mulf %498, %497 : vector<1x16x16xf32>
    %500 = arith.addf %496, %499 : vector<1x16x16xf32>
    %501 = arith.addf %461, %500 : vector<1x16x16xf32>
    %c27 = arith.constant 27 : index
    %502 = memref.load %arg1[%c27] : memref<98xf32, #tpu.memory_space<smem>>
    %c76 = arith.constant 76 : index
    %503 = memref.load %arg1[%c76] : memref<98xf32, #tpu.memory_space<smem>>
    %504 = vector.extract_strided_slice %40 {offsets = [0, 3, 0], sizes = [1, 16, 16], strides = [1, 1, 1]} : vector<1x22x16xf32> to vector<1x16x16xf32>
    %505 = vector.broadcast %502 : f32 to vector<1x16x16xf32>
    %506 = arith.mulf %505, %504 : vector<1x16x16xf32>
    %507 = vector.extract_strided_slice %47 {offsets = [0, 3, 0], sizes = [1, 16, 16], strides = [1, 1, 1]} : vector<1x22x16xf32> to vector<1x16x16xf32>
    %508 = vector.broadcast %503 : f32 to vector<1x16x16xf32>
    %509 = arith.mulf %508, %507 : vector<1x16x16xf32>
    %510 = arith.addf %506, %509 : vector<1x16x16xf32>
    %511 = arith.addf %471, %510 : vector<1x16x16xf32>
    %c34 = arith.constant 34 : index
    %512 = memref.load %arg1[%c34] : memref<98xf32, #tpu.memory_space<smem>>
    %c83 = arith.constant 83 : index
    %513 = memref.load %arg1[%c83] : memref<98xf32, #tpu.memory_space<smem>>
    %514 = vector.extract_strided_slice %40 {offsets = [0, 4, 0], sizes = [1, 16, 16], strides = [1, 1, 1]} : vector<1x22x16xf32> to vector<1x16x16xf32>
    %515 = vector.broadcast %512 : f32 to vector<1x16x16xf32>
    %516 = arith.mulf %515, %514 : vector<1x16x16xf32>
    %517 = vector.extract_strided_slice %47 {offsets = [0, 4, 0], sizes = [1, 16, 16], strides = [1, 1, 1]} : vector<1x22x16xf32> to vector<1x16x16xf32>
    %518 = vector.broadcast %513 : f32 to vector<1x16x16xf32>
    %519 = arith.mulf %518, %517 : vector<1x16x16xf32>
    %520 = arith.addf %516, %519 : vector<1x16x16xf32>
    %521 = arith.addf %481, %520 : vector<1x16x16xf32>
    %c41 = arith.constant 41 : index
    %522 = memref.load %arg1[%c41] : memref<98xf32, #tpu.memory_space<smem>>
    %c90 = arith.constant 90 : index
    %523 = memref.load %arg1[%c90] : memref<98xf32, #tpu.memory_space<smem>>
    %524 = vector.extract_strided_slice %40 {offsets = [0, 5, 0], sizes = [1, 16, 16], strides = [1, 1, 1]} : vector<1x22x16xf32> to vector<1x16x16xf32>
    %525 = vector.broadcast %522 : f32 to vector<1x16x16xf32>
    %526 = arith.mulf %525, %524 : vector<1x16x16xf32>
    %527 = vector.extract_strided_slice %47 {offsets = [0, 5, 0], sizes = [1, 16, 16], strides = [1, 1, 1]} : vector<1x22x16xf32> to vector<1x16x16xf32>
    %528 = vector.broadcast %523 : f32 to vector<1x16x16xf32>
    %529 = arith.mulf %528, %527 : vector<1x16x16xf32>
    %530 = arith.addf %526, %529 : vector<1x16x16xf32>
    %531 = arith.addf %491, %530 : vector<1x16x16xf32>
    %c48 = arith.constant 48 : index
    %532 = memref.load %arg1[%c48] : memref<98xf32, #tpu.memory_space<smem>>
    %c97 = arith.constant 97 : index
    %533 = memref.load %arg1[%c97] : memref<98xf32, #tpu.memory_space<smem>>
    %534 = vector.extract_strided_slice %40 {offsets = [0, 6, 0], sizes = [1, 16, 16], strides = [1, 1, 1]} : vector<1x22x16xf32> to vector<1x16x16xf32>
    %535 = vector.broadcast %532 : f32 to vector<1x16x16xf32>
    %536 = arith.mulf %535, %534 : vector<1x16x16xf32>
    %537 = vector.extract_strided_slice %47 {offsets = [0, 6, 0], sizes = [1, 16, 16], strides = [1, 1, 1]} : vector<1x22x16xf32> to vector<1x16x16xf32>
    %538 = vector.broadcast %533 : f32 to vector<1x16x16xf32>
    %539 = arith.mulf %538, %537 : vector<1x16x16xf32>
    %540 = arith.addf %536, %539 : vector<1x16x16xf32>
    %541 = arith.addf %501, %540 : vector<1x16x16xf32>
    %542 = arith.addf %541, %511 : vector<1x16x16xf32>
    %543 = arith.addf %521, %531 : vector<1x16x16xf32>
    %544 = arith.addf %542, %543 : vector<1x16x16xf32>
    %545 = arith.negf %544 : vector<1x16x16xf32>
    %546 = math.exp %545 : vector<1x16x16xf32>
    %cst_21 = arith.constant 1.000000e+00 : f32
    %547 = vector.broadcast %cst_21 : f32 to vector<1x16x16xf32>
    %548 = arith.addf %547, %546 : vector<1x16x16xf32>
    %549 = arith.divf %547, %548 : vector<1x16x16xf32>
    %550 = vector.shape_cast %549 : vector<1x16x16xf32> to vector<1x1x256xf32>
    %551 = vector.broadcast %550 : vector<1x1x256xf32> to vector<1x8x256xf32>
    %552 = arith.mulf %19, %551 : vector<1x8x256xf32>
    %c0_22 = arith.constant 0 : index
    %c0_23 = arith.constant 0 : index
    %c0_24 = arith.constant 0 : index
    %553 = vector.load %arg5[%c0_22, %c0_23, %c0_24] : memref<1x8x256xf32, #tpu.memory_space<vmem>>, vector<1x8x256xf32>
    tpu.vector_store %arg5[%c0_22, %c0_23, %c0_24], %552 {strides = array<i32>} : memref<1x8x256xf32, #tpu.memory_space<vmem>>, vector<1x8x256xf32>,
    return
  }
  func.func @transform_0(%arg0: i32) -> i32 {
    %c0_i32 = arith.constant 0 : i32
    %c0_i32_0 = arith.constant 0 : i32
    return %c0_i32 : i32
  }
  func.func @transform_1(%arg0: i32) -> (i32, i32) {
    %c0_i32 = arith.constant 0 : i32
    %c0_i32_0 = arith.constant 0 : i32
    %c0_i32_1 = arith.constant 0 : i32
    return %c0_i32, %c0_i32_0 : i32, i32
  }
  func.func @transform_2(%arg0: i32) -> (i32, i32) {
    %c0_i32 = arith.constant 0 : i32
    %c0_i32_0 = arith.constant 0 : i32
    %c0_i32_1 = arith.constant 0 : i32
    return %c0_i32, %c0_i32_0 : i32, i32
  }
  func.func @transform_3(%arg0: i32) -> (i32, i32, i32) {
    %c0_i32 = arith.constant 0 : i32
    %c0_i32_0 = arith.constant 0 : i32
    %c0_i32_1 = arith.constant 0 : i32
    return %arg0, %c0_i32, %c0_i32_0 : i32, i32, i32
  }
  func.func @transform_4(%arg0: i32) -> (i32, i32, i32) {
    %c0_i32 = arith.constant 0 : i32
    %c0_i32_0 = arith.constant 0 : i32
    %c0_i32_1 = arith.constant 0 : i32
    return %arg0, %c0_i32, %c0_i32_0 : i32, i32, i32
  }
}

</mosaic_0001>

<llo_original>
// kernel: tpu_custom_call.1
$region0: #{tpu_custom_call.1}
  #allocation0 [shape = 'u32[]', space=smem, size = 0x4, offset = 0x4, fixed_abs, tag = 'smem constant byte address 0x4 - core index']
  #allocation1 [shape = 'u32[144,128]{1,0:T(1,128)}', space=vmem, size = 0x12000, scoped, tag = 'internal scratch']
  %s0 = inlined_call_operand.hbm [shape: f32[98], index: 0, kind: input, shape index: {}]
  %s1 = inlined_call_operand.hbm [shape: f32[8,8], index: 1, kind: input, shape index: {}]
  %s2 = inlined_call_operand.vmem [shape: f32[1,8], index: 2, kind: input, shape index: {}]
  %s3 = inlined_call_operand.hbm [shape: f32[2,8,256], index: 3, kind: input, shape index: {}]
  %s4 = inlined_call_operand.hbm [shape: f32[2,8,256], index: 4, kind: output, shape index: {}]
  %s5 = sld [smem:[#allocation0]]
  $region61: #{tpu_custom_call.1} parent=0
    _
  %s7 = ssub.s32 1, %s5
  %s8 = scalar_select 0, %s7, %s5
  $region1: #{tpu_custom_call.1} parent=0
    #allocation2 [shape = 'u8[512]{0}', space=smem, size = 0x200, scoped, tag = 'input window, operand 0, single buffered']
    #allocation3 [shape = 's32[2]{0}', space=sflag, size = 0x8, scoped, tag = 'scoped memory for tpu_custom_call.1']
    #allocation4 [shape = 's32[2]{0}', space=sflag, size = 0x8, scoped, tag = 'scoped memory for tpu_custom_call.1']
    #allocation5 [shape = 's32[2]{0}', space=sflag, size = 0x8, scoped, tag = 'scoped memory for tpu_custom_call.1']
    #allocation6 [shape = 'u8[4096]{0}', space=vmem, size = 0x1000, scoped, tag = 'input window, operand 1, single buffered']
    #allocation7 [shape = 'u8[16384]{0}', space=vmem, size = 0x4000, scoped, tag = 'input window, operand 3']
    #allocation8 [shape = 's32[2]{0}', space=sflag, size = 0x8, scoped, tag = 'scoped memory for tpu_custom_call.1']
    #allocation9 [shape = 'u8[16384]{0}', space=vmem, size = 0x4000, scoped, tag = 'output window, operand 0']
    %9 = vsyncpa [#allocation5], 0
    %10 = vsyncpa [#allocation3], 0
    %11 = vsyncpa [#allocation8], 0
    %s12 = scalar_lea.sflag [#allocation8], 1
    %13 = vsyncpa %s12, 0
    %14 = vsyncpa [#allocation4], 0
    %s15 = scalar_lea.sflag [#allocation4], 1
    %16 = vsyncpa %s15, 0
    loop: start=0, step=1, limit=4
    $region2: #{tpu_custom_call.1} parent=1 // loop_pre_header
      _
    $region3: #{tpu_custom_call.1} parent=1 // loop_header
      %s18 = sphi 0, %s22
      %p19 = scmp.ge.s32.totalorder %s18, 4
      %s26 = sphi 0, %s26
      %s28 = sphi 0, %s26
      %s29 = sphi 0, %s28
      %s43 = sphi 0, %s29
      %s47 = sphi 0, %s47
      %s49 = sphi 0, %s47
      %s50 = sphi 0, %s49
      %s64 = sphi 0, %s50
      %s68 = sphi 0, %s68
      %s70 = sphi 0, %s68
      %s71 = sphi 0, %s70
      %s85 = sphi 0, %s71
      %s91 = sphi 0, %s93
      %s94 = sphi 0, %s91
      %s95 = sphi 0, %s94
      %s111 = sphi 0, %s95
      %s117 = sphi 0, %s119
      %s120 = sphi 0, %s117
      %s121 = sphi 0, %s120
      %s137 = sphi 0, %s121
    $region4: #{tpu_custom_call.1} parent=1 // loop_header_branch
      %21 = sbr.rel (%p19) target = $region8
    $region5: #{tpu_custom_call.1} parent=1 // loop_body
      %s23 = ssub.s32 %s18, 1
      %s24 = ssub.s32 %s18, 2
      %s25 = sadd.s32 %s18, 1
      %s27 = sadd.s32 %s26, 1
      %p30 = scmp.eq.s32.totalorder %s18, 1
      %p31 = scmp.ne.s32.totalorder %s26, %s28
      %p32 = scmp.eq.s32.totalorder %s18, 0
      %p33 = por %p31, %p32
      %p34 = scmp.ne.s32.totalorder %s26, %s28
      %p35 = scmp.eq.s32.totalorder %s23, 1
      %p36 = por %p34, %p35
      %p37 = scmp.ne.s32.totalorder %s28, %s29
      %p38 = scmp.eq.s32.totalorder %s23, 0
      %p39 = por %p37, %p38
      %p40 = scmp.ne.s32.totalorder %s28, %s29
      %p41 = scmp.eq.s32.totalorder %s24, 1
      %p42 = por %p40, %p41
      %p44 = scmp.ne.s32.totalorder %s29, %s43
      %p45 = scmp.eq.s32.totalorder %s24, 0
      %p46 = por %p44, %p45
      %s48 = sadd.s32 %s47, 1
      %p51 = scmp.eq.s32.totalorder %s18, 1
      %p52 = scmp.ne.s32.totalorder %s47, %s49
      %p53 = scmp.eq.s32.totalorder %s18, 0
      %p54 = por %p52, %p53
      %p55 = scmp.ne.s32.totalorder %s47, %s49
      %p56 = scmp.eq.s32.totalorder %s23, 1
      %p57 = por %p55, %p56
      %p58 = scmp.ne.s32.totalorder %s49, %s50
      %p59 = scmp.eq.s32.totalorder %s23, 0
      %p60 = por %p58, %p59
      %p61 = scmp.ne.s32.totalorder %s49, %s50
      %p62 = scmp.eq.s32.totalorder %s24, 1
      %p63 = por %p61, %p62
      %p65 = scmp.ne.s32.totalorder %s50, %s64
      %p66 = scmp.eq.s32.totalorder %s24, 0
      %p67 = por %p65, %p66
      %s69 = sadd.s32 %s68, 1
      %p72 = scmp.eq.s32.totalorder %s18, 1
      %p73 = scmp.ne.s32.totalorder %s68, %s70
      %p74 = scmp.eq.s32.totalorder %s18, 0
      %p75 = por %p73, %p74
      %p76 = scmp.ne.s32.totalorder %s68, %s70
      %p77 = scmp.eq.s32.totalorder %s23, 1
      %p78 = por %p76, %p77
      %p79 = scmp.ne.s32.totalorder %s70, %s71
      %p80 = scmp.eq.s32.totalorder %s23, 0
      %p81 = por %p79, %p80
      %p82 = scmp.ne.s32.totalorder %s70, %s71
      %p83 = scmp.eq.s32.totalorder %s24, 1
      %p84 = por %p82, %p83
      %p86 = scmp.ne.s32.totalorder %s71, %s85
      %p87 = scmp.eq.s32.totalorder %s24, 0
      %p88 = por %p86, %p87
      %s89 = ssub.s32 %s18, %s25
      %p90 = scmp.eq.s32.totalorder %s89, 0
      %s92 = sadd.s32 %s91, 1
      %s93 = scalar_select %p90, %s91, %s92
      %p96 = pneg %p90
      %p97 = scmp.eq.s32.totalorder %s18, 1
      %p98 = por %p96, %p97
      %p99 = scmp.ne.s32.totalorder %s91, %s94
      %p100 = scmp.eq.s32.totalorder %s18, 0
      %p101 = por %p99, %p100
      %p102 = scmp.ne.s32.totalorder %s91, %s94
      %p103 = scmp.eq.s32.totalorder %s23, 1
      %p104 = por %p102, %p103
      %p105 = scmp.ne.s32.totalorder %s94, %s95
      %p106 = scmp.eq.s32.totalorder %s23, 0
      %p107 = por %p105, %p106
      %p108 = scmp.ne.s32.totalorder %s94, %s95
      %p109 = scmp.eq.s32.totalorder %s24, 1
      %p110 = por %p108, %p109
      %p112 = scmp.ne.s32.totalorder %s95, %s111
      %p113 = scmp.eq.s32.totalorder %s24, 0
      %p114 = por %p112, %p113
      %s115 = ssub.s32 %s18, %s25
      %p116 = scmp.eq.s32.totalorder %s115, 0
      %s118 = sadd.s32 %s117, 1
      %s119 = scalar_select %p116, %s117, %s118
      %p122 = pneg %p116
      %p123 = scmp.eq.s32.totalorder %s18, 1
      %p124 = por %p122, %p123
      %p125 = scmp.ne.s32.totalorder %s117, %s120
      %p126 = scmp.eq.s32.totalorder %s18, 0
      %p127 = por %p125, %p126
      %p128 = scmp.ne.s32.totalorder %s117, %s120
      %p129 = scmp.eq.s32.totalorder %s23, 1
      %p130 = por %p128, %p129
      %p131 = scmp.ne.s32.totalorder %s120, %s121
      %p132 = scmp.eq.s32.totalorder %s23, 0
      %p133 = por %p131, %p132
      %p134 = scmp.ne.s32.totalorder %s120, %s121
      %p135 = scmp.eq.s32.totalorder %s24, 1
      %p136 = por %p134, %p135
      %p138 = scmp.ne.s32.totalorder %s121, %s137
      %p139 = scmp.eq.s32.totalorder %s24, 0
      %p140 = por %p138, %p139
      %p141 = scmp.le.s32.totalorder 1, %s18
      %p142 = scmp.lt.s32.totalorder %s18, 3
      %p143 = pnand %p141, %p142
      %p144 = pneg %p143
      // Predicated region
      $region9: #{tpu_custom_call.1} parent=5 // pred_check
        _
      $region10: #{tpu_custom_call.1} parent=5 // pred_check_branch
        %146 = sbr.rel (%p143) target = $region12
      $region11: #{tpu_custom_call.1} parent=5 // pred_region
        %s147 = ssub.s32 %s18, 1
        // Predicated region
        $region13: #{tpu_custom_call.1} parent=11 // pred_check
          %p148 = pneg %p39
        $region14: #{tpu_custom_call.1} parent=11 // pred_check_branch
          %150 = sbr.rel (%p148) target = $region16
        $region15: #{tpu_custom_call.1} parent=11 // pred_region
          %s152 = ssub.s32 16, 16
          %153 = vsyncadd [#allocation5], %s152
          %156 = dma.hbm_to_smem %s0, 16, [#allocation2], [#allocation5]
        $region16: #{tpu_custom_call.1} parent=11 // pred_fallthru
          _
        // Predicated region
        $region17: #{tpu_custom_call.1} parent=11 // pred_check
          %p157 = pneg %p60
        $region18: #{tpu_custom_call.1} parent=11 // pred_check_branch
          %159 = sbr.rel (%p157) target = $region20
        $region19: #{tpu_custom_call.1} parent=11 // pred_region
          %s161 = ssub.s32 128, 128
          %162 = vsyncadd [#allocation3], %s161
          %s164 = sshll.u32 [#allocation6], 4
          %s165 = int_to_ptr.vmem [resolvable:$true] %s164
          %167 = dma.hbm_to_vmem [thread:$0]  %s1, 128, %s165, [#allocation3]
        $region20: #{tpu_custom_call.1} parent=11 // pred_fallthru
          _
        // Predicated region
        $region21: #{tpu_custom_call.1} parent=11 // pred_check
          %p168 = pneg %p81
        $region22: #{tpu_custom_call.1} parent=11 // pred_check_branch
          %170 = sbr.rel (%p168) target = $region24
        $region23: #{tpu_custom_call.1} parent=11 // pred_region
          _
        $region24: #{tpu_custom_call.1} parent=11 // pred_fallthru
          _
      $region12: #{tpu_custom_call.1} parent=5 // pred_fallthru
        _
      %p171 = scmp.lt.s32.totalorder %s18, 2
      // Predicated region
      $region25: #{tpu_custom_call.1} parent=5 // pred_check
        %p172 = pneg %p171
      $region26: #{tpu_custom_call.1} parent=5 // pred_check_branch
        %174 = sbr.rel (%p172) target = $region28
      $region27: #{tpu_custom_call.1} parent=5 // pred_region
        // Predicated region
        $region29: #{tpu_custom_call.1} parent=27 // pred_check
          %p175 = pneg %p101
        $region30: #{tpu_custom_call.1} parent=27 // pred_check_branch
          %177 = sbr.rel (%p175) target = $region32
        $region31: #{tpu_custom_call.1} parent=27 // pred_region
          %s178 = sand.u32 %s91, 1
          %s179 = scalar_lea.sflag [#allocation8], %s178
          %s180 = sand.u32 %s91, 1
          %s181 = smul.addr %s180, 16
          %s182 = scalar_lea.vmem [#allocation7], %s181
          %s184 = ssub.s32 256, 256
          %185 = vsyncadd %s179, %s184
          %s186 = smul.addr %s18, 2
          %s187 = smul.addr %s186, 128
          %s188 = scalar_lea.hbm %s3, %s187
          %s190 = sshll.u32 %s182, 4
          %s191 = int_to_ptr.vmem [resolvable:$true] %s190
          %193 = dma.hbm_to_vmem [thread:$0]  %s188, 256, %s191, %s179
        $region32: #{tpu_custom_call.1} parent=27 // pred_fallthru
          _
      $region28: #{tpu_custom_call.1} parent=5 // pred_fallthru
        _
      %p194 = scmp.le.s32.totalorder 1, %s18
      %p195 = scmp.lt.s32.totalorder %s18, 3
      %p196 = pnand %p194, %p195
      %p197 = pneg %p196
      // Predicated region
      $region33: #{tpu_custom_call.1} parent=5 // pred_check
        _
      $region34: #{tpu_custom_call.1} parent=5 // pred_check_branch
        %199 = sbr.rel (%p196) target = $region36
      $region35: #{tpu_custom_call.1} parent=5 // pred_region
        %s200 = ssub.s32 %s18, 1
        // Predicated region
        $region37: #{tpu_custom_call.1} parent=35 // pred_check
          %p201 = pneg %p39
        $region38: #{tpu_custom_call.1} parent=35 // pred_check_branch
          %203 = sbr.rel (%p201) target = $region40
        $region39: #{tpu_custom_call.1} parent=35 // pred_region
          %204 = dma.done [#allocation5], 16
        $region40: #{tpu_custom_call.1} parent=35 // pred_fallthru
          _
        // Predicated region
        $region41: #{tpu_custom_call.1} parent=35 // pred_check
          %p205 = pneg %p60
        $region42: #{tpu_custom_call.1} parent=35 // pred_check_branch
          %207 = sbr.rel (%p205) target = $region44
        $region43: #{tpu_custom_call.1} parent=35 // pred_region
          %208 = dma.done [#allocation3], 128
        $region44: #{tpu_custom_call.1} parent=35 // pred_fallthru
          _
        %s209 = sand.u32 %s94, 1
        %s210 = scalar_lea.sflag [#allocation8], %s209
        %s211 = sand.u32 %s94, 1
        %s212 = smul.addr %s211, 16
        %s213 = scalar_lea.vmem [#allocation7], %s212
        // Predicated region
        $region45: #{tpu_custom_call.1} parent=35 // pred_check
          %p214 = pneg %p107
        $region46: #{tpu_custom_call.1} parent=35 // pred_check_branch
          %216 = sbr.rel (%p214) target = $region48
        $region47: #{tpu_custom_call.1} parent=35 // pred_region
          %217 = dma.done %s210, 256
        $region48: #{tpu_custom_call.1} parent=35 // pred_fallthru
          _
        %218 = sfence
        %p219 = pneg %p39
        %p220 = pneg %p36
        %p221 = pneg %p60
        %p222 = pneg %p57
        %p223 = pneg %p81
        %p224 = pneg %p78
        %s225 = sand.u32 %s94, 1
        %s226 = scalar_lea.sflag [#allocation8], %s225
        %s227 = sand.u32 %s94, 1
        %s228 = smul.addr %s227, 16
        %s229 = scalar_lea.vmem [#allocation7], %s228
        %p230 = pneg %p107
        %p231 = pneg %p104
        %p232 = pneg %p133
        %p233 = pneg %p130
        %s234 = sand.u32 %s120, 1
        %s235 = scalar_lea.sflag [#allocation4], %s234
        %s236 = sand.u32 %s120, 1
        %s237 = smul.addr %s236, 16
        %s238 = scalar_lea.vmem [#allocation9], %s237
        %v239 = vld [vmem:[%s213] sm:$0xff]
        %v240 = vld [vmem:[%s213 + $0x8] sm:$0xff]
        %v241 = vadd.f32 %v239, %v240
        %242 = vadd.xlane.f32.xlu0 %v241
        %v243 = vpop.xlane.xlu0 %242
        %v244 = vrcp.pop 256.0
        %v245 = vmul.f32 %v243, %v244
        %v246 = vld [vmem:[#allocation6] sm:$0xff]
        %v248 = vlaneseq
        %v249 = vand.u32 %v248, 127
        %v250 = vlaneseq
        %v251 = vshrl.u32 %v250, 7
        %v252 = vsub.s32 %v249, %v251
        %v253 = vrot.slane %v245, %v252
        %vm254 = vcmask 1042434
        %v255 = vsel %vm254, %v253, %v253
        %vm256 = vcmask 1043459
        %v257 = vsel %vm256, %v253, %v255
        %vm258 = vcmask 1044484
        %v259 = vsel %vm258, %v253, %v257
        %vm260 = vcmask 1045509
        %v261 = vsel %vm260, %v253, %v259
        %vm262 = vcmask 1046534
        %v263 = vsel %vm262, %v253, %v261
        %vm264 = vcmask 1047559
        %v265 = vsel %vm264, %v253, %v263
        %v267 = vmul.f32 %v246, %v265
        %vm268 = vcmask 64512
        %v269 = vsel %vm268, %v267, 0.0
        %270 = vadd.xlane.f32.xlu0 %v269
        %v271 = vpop.xlane.xlu0 %270
        %v272 = vld [vmem:[%s2] sm:$0x1]
        %v274 = vlaneseq
        %v275 = vshrl.u32 %v274, 7
        %v276 = vsub.s32 0, %v275
        %v277 = vrot.slane %v272, %v276
        %279 = vbcast.lane.b32.xlu0 %v277, 256
        %v280 = vpop.permute.xlu0 %279
        %v282 = vadd.f32 %v271, %v280
        %v283 = vxor.u32 %v282, 2147483648
        %v284 = vmul.f32 %v283, 1.442695
        %v285 = vpow.pop %v284
        %v286 = vadd.f32 %v285, 1.0
        %v287 = vrcp.pop %v286
        %v288 = vmul.f32 1.0, %v287
        %290 = vset.pattern.permute.xlu0 0
        %291 = vperm.xlu0 %290, %v288
        %v292 = vpop.permute.xlu0 %291
        %v294 = vmul.f32 %v239, %v292
        %v295 = vmul.f32 %v240, %v292
        %v296 = vrot.slane %v294, 4
        %v297 = vadd.f32 %v294, %v296
        %v298 = vrot.slane %v297, 2
        %v299 = vadd.f32 %v297, %v298
        %v300 = vrot.slane %v299, 1
        %v301 = vadd.f32 %v299, %v300
        %v302 = vrot.slane %v295, 4
        %v303 = vadd.f32 %v295, %v302
        %v304 = vrot.slane %v303, 2
        %v305 = vadd.f32 %v303, %v304
        %v306 = vrot.slane %v305, 1
        %v307 = vadd.f32 %v305, %v306
        %v308 = vrcp.pop 8.0
        %v309 = vmul.f32 %v301, %v308
        %v310 = vmul.f32 %v307, %v308
        %v311 = vrot.slane %v294, 4
        %v312 = vmax.f32 %v294, %v311
        %v313 = vrot.slane %v312, 2
        %v314 = vmax.f32 %v312, %v313
        %v315 = vrot.slane %v314, 1
        %v316 = vmax.f32 %v314, %v315
        %v317 = vrot.slane %v295, 4
        %v318 = vmax.f32 %v295, %v317
        %v319 = vrot.slane %v318, 2
        %v320 = vmax.f32 %v318, %v319
        %v321 = vrot.slane %v320, 1
        %v322 = vmax.f32 %v320, %v321
        %324 = vrot.lane.b32.xlu0 %v309, 112
        %v325 = vpop.permute.xlu0 %324
        %327 = vrot.lane.b32.xlu0 %v309, 96
        %v328 = vpop.permute.xlu0 %327
        %330 = vrot.lane.b32.xlu0 %v309, 80
        %v331 = vpop.permute.xlu0 %330
        %333 = vrot.lane.b32.xlu0 %v309, 64
        %v334 = vpop.permute.xlu0 %333
        %336 = vrot.lane.b32.xlu0 %v309, 48
        %v337 = vpop.permute.xlu0 %336
        %339 = vrot.lane.b32.xlu0 %v309, 32
        %v340 = vpop.permute.xlu0 %339
        %342 = vrot.lane.b32.xlu0 %v309, 16
        %v343 = vpop.permute.xlu0 %342
        %346 = vrot.lane.b32.xlu0 %v310, 112
        %v347 = vpop.permute.xlu0 %346
        %349 = vrot.lane.b32.xlu0 %v310, 96
        %v350 = vpop.permute.xlu0 %349
        %352 = vrot.lane.b32.xlu0 %v310, 80
        %v353 = vpop.permute.xlu0 %352
        %355 = vrot.lane.b32.xlu0 %v310, 64
        %v356 = vpop.permute.xlu0 %355
        %358 = vrot.lane.b32.xlu0 %v310, 48
        %v359 = vpop.permute.xlu0 %358
        %361 = vrot.lane.b32.xlu0 %v310, 32
        %v362 = vpop.permute.xlu0 %361
        %364 = vrot.lane.b32.xlu0 %v310, 16
        %v365 = vpop.permute.xlu0 %364
        %v367 = vcombine.low %v309, %v328
        %v369 = vunpack.c.l.s4 1983009808
        %v370 = vunpack.c.0.s8 %v369
        %v371 = vlaneseq
        %v372 = vshrl.u32 %v371, 7
        %v373 = vsub.s32 %v370, %v372
        %v374 = vrot.slane %v367, %v373
        %v375 = vcombine.low %v325, %v331
        %v377 = vunpack.c.l.s4 1983009808
        %v378 = vunpack.c.0.s8 %v377
        %v379 = vlaneseq
        %v380 = vshrl.u32 %v379, 7
        %v381 = vsub.s32 %v378, %v380
        %v382 = vrot.slane %v375, %v381
        %v383 = vcombine.low %v334, %v340
        %v385 = vunpack.c.l.s4 1983009808
        %v386 = vunpack.c.0.s8 %v385
        %v387 = vlaneseq
        %v388 = vshrl.u32 %v387, 7
        %v389 = vsub.s32 %v386, %v388
        %v390 = vrot.slane %v383, %v389
        %v391 = vcombine.low %v337, %v343
        %v393 = vunpack.c.l.s4 1983009808
        %v394 = vunpack.c.0.s8 %v393
        %v395 = vlaneseq
        %v396 = vshrl.u32 %v395, 7
        %v397 = vsub.s32 %v394, %v396
        %v398 = vrot.slane %v391, %v397
        %v399 = vcombine.low %v374, %v382
        %v401 = vunpack.c.l.s4 1934713408
        %v402 = vunpack.c.0.s8 %v401
        %v403 = vlaneseq
        %v404 = vshrl.u32 %v403, 7
        %v405 = vsub.s32 %v402, %v404
        %v406 = vrot.slane %v399, %v405
        %v407 = vcombine.low %v390, %v398
        %v409 = vunpack.c.l.s4 1934713408
        %v410 = vunpack.c.0.s8 %v409
        %v411 = vlaneseq
        %v412 = vshrl.u32 %v411, 7
        %v413 = vsub.s32 %v410, %v412
        %v414 = vrot.slane %v407, %v413
        %v415 = vcombine.low %v406, %v414
        %v416 = vcombine.low %v310, %v350
        %v418 = vunpack.c.l.s4 1983009808
        %v419 = vunpack.c.0.s8 %v418
        %v420 = vlaneseq
        %v421 = vshrl.u32 %v420, 7
        %v422 = vsub.s32 %v419, %v421
        %v423 = vrot.slane %v416, %v422
        %v424 = vcombine.low %v347, %v353
        %v426 = vunpack.c.l.s4 1983009808
        %v427 = vunpack.c.0.s8 %v426
        %v428 = vlaneseq
        %v429 = vshrl.u32 %v428, 7
        %v430 = vsub.s32 %v427, %v429
        %v431 = vrot.slane %v424, %v430
        %v432 = vcombine.low %v356, %v362
        %v434 = vunpack.c.l.s4 1983009808
        %v435 = vunpack.c.0.s8 %v434
        %v436 = vlaneseq
        %v437 = vshrl.u32 %v436, 7
        %v438 = vsub.s32 %v435, %v437
        %v439 = vrot.slane %v432, %v438
        %v440 = vcombine.low %v359, %v365
        %v442 = vunpack.c.l.s4 1983009808
        %v443 = vunpack.c.0.s8 %v442
        %v444 = vlaneseq
        %v445 = vshrl.u32 %v444, 7
        %v446 = vsub.s32 %v443, %v445
        %v447 = vrot.slane %v440, %v446
        %v448 = vcombine.low %v423, %v431
        %v450 = vunpack.c.l.s4 1934713408
        %v451 = vunpack.c.0.s8 %v450
        %v452 = vlaneseq
        %v453 = vshrl.u32 %v452, 7
        %v454 = vsub.s32 %v451, %v453
        %v455 = vrot.slane %v448, %v454
        %v456 = vcombine.low %v439, %v447
        %v458 = vunpack.c.l.s4 1934713408
        %v459 = vunpack.c.0.s8 %v458
        %v460 = vlaneseq
        %v461 = vshrl.u32 %v460, 7
        %v462 = vsub.s32 %v459, %v461
        %v463 = vrot.slane %v456, %v462
        %v464 = vcombine.low %v455, %v463
        %466 = vrot.lane.b32.xlu0 %v316, 112
        %v467 = vpop.permute.xlu0 %466
        %469 = vrot.lane.b32.xlu0 %v316, 96
        %v470 = vpop.permute.xlu0 %469
        %472 = vrot.lane.b32.xlu0 %v316, 80
        %v473 = vpop.permute.xlu0 %472
        %475 = vrot.lane.b32.xlu0 %v316, 64
        %v476 = vpop.permute.xlu0 %475
        %478 = vrot.lane.b32.xlu0 %v316, 48
        %v479 = vpop.permute.xlu0 %478
        %481 = vrot.lane.b32.xlu0 %v316, 32
        %v482 = vpop.permute.xlu0 %481
        %484 = vrot.lane.b32.xlu0 %v316, 16
        %v485 = vpop.permute.xlu0 %484
        %488 = vrot.lane.b32.xlu0 %v322, 112
        %v489 = vpop.permute.xlu0 %488
        %491 = vrot.lane.b32.xlu0 %v322, 96
        %v492 = vpop.permute.xlu0 %491
        %494 = vrot.lane.b32.xlu0 %v322, 80
        %v495 = vpop.permute.xlu0 %494
        %497 = vrot.lane.b32.xlu0 %v322, 64
        %v498 = vpop.permute.xlu0 %497
        %500 = vrot.lane.b32.xlu0 %v322, 48
        %v501 = vpop.permute.xlu0 %500
        %503 = vrot.lane.b32.xlu0 %v322, 32
        %v504 = vpop.permute.xlu0 %503
        %506 = vrot.lane.b32.xlu0 %v322, 16
        %v507 = vpop.permute.xlu0 %506
        %v509 = vcombine.low %v316, %v470
        %v511 = vunpack.c.l.s4 1983009808
        %v512 = vunpack.c.0.s8 %v511
        %v513 = vlaneseq
        %v514 = vshrl.u32 %v513, 7
        %v515 = vsub.s32 %v512, %v514
        %v516 = vrot.slane %v509, %v515
        %v517 = vcombine.low %v467, %v473
        %v519 = vunpack.c.l.s4 1983009808
        %v520 = vunpack.c.0.s8 %v519
        %v521 = vlaneseq
        %v522 = vshrl.u32 %v521, 7
        %v523 = vsub.s32 %v520, %v522
        %v524 = vrot.slane %v517, %v523
        %v525 = vcombine.low %v476, %v482
        %v527 = vunpack.c.l.s4 1983009808
        %v528 = vunpack.c.0.s8 %v527
        %v529 = vlaneseq
        %v530 = vshrl.u32 %v529, 7
        %v531 = vsub.s32 %v528, %v530
        %v532 = vrot.slane %v525, %v531
        %v533 = vcombine.low %v479, %v485
        %v535 = vunpack.c.l.s4 1983009808
        %v536 = vunpack.c.0.s8 %v535
        %v537 = vlaneseq
        %v538 = vshrl.u32 %v537, 7
        %v539 = vsub.s32 %v536, %v538
        %v540 = vrot.slane %v533, %v539
        %v541 = vcombine.low %v516, %v524
        %v543 = vunpack.c.l.s4 1934713408
        %v544 = vunpack.c.0.s8 %v543
        %v545 = vlaneseq
        %v546 = vshrl.u32 %v545, 7
        %v547 = vsub.s32 %v544, %v546
        %v548 = vrot.slane %v541, %v547
        %v549 = vcombine.low %v532, %v540
        %v551 = vunpack.c.l.s4 1934713408
        %v552 = vunpack.c.0.s8 %v551
        %v553 = vlaneseq
        %v554 = vshrl.u32 %v553, 7
        %v555 = vsub.s32 %v552, %v554
        %v556 = vrot.slane %v549, %v555
        %v557 = vcombine.low %v548, %v556
        %v558 = vcombine.low %v322, %v492
        %v560 = vunpack.c.l.s4 1983009808
        %v561 = vunpack.c.0.s8 %v560
        %v562 = vlaneseq
        %v563 = vshrl.u32 %v562, 7
        %v564 = vsub.s32 %v561, %v563
        %v565 = vrot.slane %v558, %v564
        %v566 = vcombine.low %v489, %v495
        %v568 = vunpack.c.l.s4 1983009808
        %v569 = vunpack.c.0.s8 %v568
        %v570 = vlaneseq
        %v571 = vshrl.u32 %v570, 7
        %v572 = vsub.s32 %v569, %v571
        %v573 = vrot.slane %v566, %v572
        %v574 = vcombine.low %v498, %v504
        %v576 = vunpack.c.l.s4 1983009808
        %v577 = vunpack.c.0.s8 %v576
        %v578 = vlaneseq
        %v579 = vshrl.u32 %v578, 7
        %v580 = vsub.s32 %v577, %v579
        %v581 = vrot.slane %v574, %v580
        %v582 = vcombine.low %v501, %v507
        %v584 = vunpack.c.l.s4 1983009808
        %v585 = vunpack.c.0.s8 %v584
        %v586 = vlaneseq
        %v587 = vshrl.u32 %v586, 7
        %v588 = vsub.s32 %v585, %v587
        %v589 = vrot.slane %v582, %v588
        %v590 = vcombine.low %v565, %v573
        %v592 = vunpack.c.l.s4 1934713408
        %v593 = vunpack.c.0.s8 %v592
        %v594 = vlaneseq
        %v595 = vshrl.u32 %v594, 7
        %v596 = vsub.s32 %v593, %v595
        %v597 = vrot.slane %v590, %v596
        %v598 = vcombine.low %v581, %v589
        %v600 = vunpack.c.l.s4 1934713408
        %v601 = vunpack.c.0.s8 %v600
        %v602 = vlaneseq
        %v603 = vshrl.u32 %v602, 7
        %v604 = vsub.s32 %v601, %v603
        %v605 = vrot.slane %v598, %v604
        %v606 = vcombine.low %v597, %v605
        %vm609 = vcmask 1042432
        %v610 = vrot.slane %v415, 5
        %v611 = vrot.slane %v464, 5
        %v612 = vsel %vm609, %v610, %v611
        %v615 = vsel %vm609, 0.0, %v610
        %v616 = vsel %vm609, %v611, 0.0
        %619 = vrot.lane.b32.xlu0 %v615, 3
        %v620 = vpop.permute.xlu0 %619
        %621 = vrot.lane.b32.xlu0 %v612, 3
        %v622 = vpop.permute.xlu0 %621
        %623 = vrot.lane.b32.xlu0 %v616, 3
        %v624 = vpop.permute.xlu0 %623
        %vm628 = vcmask 23552
        %v629 = vsel %vm628, 0.0, %v620
        %v630 = vsel %vm628, 0.0, %v622
        %v631 = vsel %vm628, 0.0, %v624
        %vm632 = vcmask 154624
        %v633 = vsel %vm632, %v629, 0.0
        %v634 = vsel %vm632, %v630, 0.0
        %v635 = vsel %vm632, %v631, 0.0
        %v638 = vrot.slane %v557, 5
        %v639 = vrot.slane %v606, 5
        %v640 = vsel %vm609, %v638, %v639
        %v643 = vsel %vm609, 0.0, %v638
        %v644 = vsel %vm609, %v639, 0.0
        %647 = vrot.lane.b32.xlu0 %v643, 3
        %v648 = vpop.permute.xlu0 %647
        %649 = vrot.lane.b32.xlu0 %v640, 3
        %v650 = vpop.permute.xlu0 %649
        %651 = vrot.lane.b32.xlu0 %v644, 3
        %v652 = vpop.permute.xlu0 %651
        %v656 = vsel %vm628, 0.0, %v648
        %v657 = vsel %vm628, 0.0, %v650
        %v658 = vsel %vm628, 0.0, %v652
        %v659 = vsel %vm632, %v656, 0.0
        %v660 = vsel %vm632, %v657, 0.0
        %v661 = vsel %vm632, %v658, 0.0
        %s662 = sld [smem:[#allocation2]]
        %s663 = sld [smem:[#allocation2 + $0x31]]
        %v664 = vstv %s662
        %v665 = vmul.f32 %v664, %v633
        %v666 = vmul.f32 %v664, %v634
        %v667 = vstv %s663
        %v668 = vmul.f32 %v667, %v659
        %v669 = vmul.f32 %v667, %v660
        %v670 = vadd.f32 %v665, %v668
        %v671 = vadd.f32 %v666, %v669
        %v672 = vadd.f32 %v670, 0.0
        %v673 = vadd.f32 %v671, 0.0
        %s674 = sld [smem:[#allocation2 + $0x7]]
        %s675 = sld [smem:[#allocation2 + $0x38]]
        %v676 = vstv %s674
        %v677 = vmul.f32 %v676, %v633
        %v678 = vmul.f32 %v676, %v634
        %v679 = vmul.f32 %v676, %v635
        %v680 = vstv %s675
        %v681 = vmul.f32 %v680, %v659
        %v682 = vmul.f32 %v680, %v660
        %v683 = vmul.f32 %v680, %v661
        %v684 = vadd.f32 %v677, %v681
        %v685 = vadd.f32 %v678, %v682
        %v686 = vadd.f32 %v679, %v683
        %v687 = vadd.f32 %v684, 0.0
        %v688 = vadd.f32 %v685, 0.0
        %v689 = vadd.f32 %v686, 0.0
        %s690 = sld [smem:[#allocation2 + $0xe]]
        %s691 = sld [smem:[#allocation2 + $0x3f]]
        %v692 = vstv %s690
        %v693 = vmul.f32 %v692, %v633
        %v694 = vmul.f32 %v692, %v634
        %v695 = vmul.f32 %v692, %v635
        %v696 = vstv %s691
        %v697 = vmul.f32 %v696, %v659
        %v698 = vmul.f32 %v696, %v660
        %v699 = vmul.f32 %v696, %v661
        %v700 = vadd.f32 %v693, %v697
        %v701 = vadd.f32 %v694, %v698
        %v702 = vadd.f32 %v695, %v699
        %v703 = vadd.f32 %v700, 0.0
        %v704 = vadd.f32 %v701, 0.0
        %v705 = vadd.f32 %v702, 0.0
        %s706 = sld [smem:[#allocation2 + $0x15]]
        %s707 = sld [smem:[#allocation2 + $0x46]]
        %v708 = vstv %s706
        %v709 = vmul.f32 %v708, %v633
        %v710 = vmul.f32 %v708, %v634
        %v711 = vmul.f32 %v708, %v635
        %v712 = vstv %s707
        %v713 = vmul.f32 %v712, %v659
        %v714 = vmul.f32 %v712, %v660
        %v715 = vmul.f32 %v712, %v661
        %v716 = vadd.f32 %v709, %v713
        %v717 = vadd.f32 %v710, %v714
        %v718 = vadd.f32 %v711, %v715
        %v719 = vadd.f32 %v716, 0.0
        %v720 = vadd.f32 %v717, 0.0
        %v721 = vadd.f32 %v718, 0.0
        %s722 = sld [smem:[#allocation2 + $0x1c]]
        %s723 = sld [smem:[#allocation2 + $0x4d]]
        %v724 = vstv %s722
        %v725 = vmul.f32 %v724, %v633
        %v726 = vmul.f32 %v724, %v634
        %v727 = vmul.f32 %v724, %v635
        %v728 = vstv %s723
        %v729 = vmul.f32 %v728, %v659
        %v730 = vmul.f32 %v728, %v660
        %v731 = vmul.f32 %v728, %v661
        %v732 = vadd.f32 %v725, %v729
        %v733 = vadd.f32 %v726, %v730
        %v734 = vadd.f32 %v727, %v731
        %vm738 = vcmask 1043456
        %v739 = vrot.slane %v732, 4
        %v740 = vrot.slane %v733, 4
        %v741 = vsel %vm738, %v739, %v740
        %v742 = vrot.slane %v734, 4
        %v743 = vsel %vm738, %v740, %v742
        %v746 = vadd.f32 %v672, %v741
        %v747 = vadd.f32 %v673, %v743
        %s748 = sld [smem:[#allocation2 + $0x23]]
        %s749 = sld [smem:[#allocation2 + $0x54]]
        %v750 = vstv %s748
        %v751 = vmul.f32 %v750, %v633
        %v752 = vmul.f32 %v750, %v634
        %v753 = vmul.f32 %v750, %v635
        %v754 = vstv %s749
        %v755 = vmul.f32 %v754, %v659
        %v756 = vmul.f32 %v754, %v660
        %v757 = vmul.f32 %v754, %v661
        %v758 = vadd.f32 %v751, %v755
        %v759 = vadd.f32 %v752, %v756
        %v760 = vadd.f32 %v753, %v757
        %v764 = vrot.slane %v758, 4
        %v765 = vrot.slane %v759, 4
        %v766 = vsel %vm738, %v764, %v765
        %v767 = vrot.slane %v760, 4
        %v768 = vsel %vm738, %v765, %v767
        %v772 = vadd.f32 %v687, %v766
        %v773 = vadd.f32 %v688, %v768
        %v774 = vadd.f32 %v689, %v767
        %s775 = sld [smem:[#allocation2 + $0x2a]]
        %s776 = sld [smem:[#allocation2 + $0x5b]]
        %v777 = vstv %s775
        %v778 = vmul.f32 %v777, %v633
        %v779 = vmul.f32 %v777, %v634
        %v780 = vmul.f32 %v777, %v635
        %v781 = vstv %s776
        %v782 = vmul.f32 %v781, %v659
        %v783 = vmul.f32 %v781, %v660
        %v784 = vmul.f32 %v781, %v661
        %v785 = vadd.f32 %v778, %v782
        %v786 = vadd.f32 %v779, %v783
        %v787 = vadd.f32 %v780, %v784
        %v791 = vrot.slane %v785, 4
        %v792 = vrot.slane %v786, 4
        %v793 = vsel %vm738, %v791, %v792
        %v794 = vrot.slane %v787, 4
        %v795 = vsel %vm738, %v792, %v794
        %v799 = vadd.f32 %v703, %v793
        %v800 = vadd.f32 %v704, %v795
        %v801 = vadd.f32 %v705, %v794
        %s802 = sld [smem:[#allocation2 + $0x1]]
        %s803 = sld [smem:[#allocation2 + $0x32]]
        %v804 = vstv %s802
        %v805 = vmul.f32 %v804, %v633
        %v806 = vmul.f32 %v804, %v634
        %v807 = vstv %s803
        %v808 = vmul.f32 %v807, %v659
        %v809 = vmul.f32 %v807, %v660
        %v810 = vadd.f32 %v805, %v808
        %v811 = vadd.f32 %v806, %v809
        %v814 = vrot.slane %v810, 5
        %v815 = vrot.slane %v811, 5
        %v816 = vsel %vm609, %v814, %v815
        %817 = vrot.lane.b32.xlu0 %v814, 127
        %v818 = vpop.permute.xlu0 %817
        %819 = vrot.lane.b32.xlu0 %v816, 127
        %v820 = vpop.permute.xlu0 %819
        %821 = vrot.lane.b32.xlu0 %v815, 127
        %v822 = vpop.permute.xlu0 %821
        %v826 = vadd.f32 %v719, %v818
        %v827 = vadd.f32 %v720, %v820
        %v828 = vadd.f32 %v721, %v822
        %s829 = sld [smem:[#allocation2 + $0x8]]
        %s830 = sld [smem:[#allocation2 + $0x39]]
        %v831 = vstv %s829
        %v832 = vmul.f32 %v831, %v633
        %v833 = vmul.f32 %v831, %v634
        %v834 = vmul.f32 %v831, %v635
        %v835 = vstv %s830
        %v836 = vmul.f32 %v835, %v659
        %v837 = vmul.f32 %v835, %v660
        %v838 = vmul.f32 %v835, %v661
        %v839 = vadd.f32 %v832, %v836
        %v840 = vadd.f32 %v833, %v837
        %v841 = vadd.f32 %v834, %v838
        %vm845 = vcmask 1046528
        %v846 = vrot.slane %v839, 1
        %v847 = vrot.slane %v840, 1
        %v848 = vsel %vm845, %v846, %v847
        %v849 = vrot.slane %v841, 1
        %v850 = vsel %vm845, %v847, %v849
        %851 = vrot.lane.b32.xlu0 %v848, 127
        %v852 = vpop.permute.xlu0 %851
        %853 = vrot.lane.b32.xlu0 %v850, 127
        %v854 = vpop.permute.xlu0 %853
        %v857 = vadd.f32 %v746, %v852
        %v858 = vadd.f32 %v747, %v854
        %s859 = sld [smem:[#allocation2 + $0xf]]
        %s860 = sld [smem:[#allocation2 + $0x40]]
        %v861 = vstv %s859
        %v862 = vmul.f32 %v861, %v633
        %v863 = vmul.f32 %v861, %v634
        %v864 = vmul.f32 %v861, %v635
        %v865 = vstv %s860
        %v866 = vmul.f32 %v865, %v659
        %v867 = vmul.f32 %v865, %v660
        %v868 = vmul.f32 %v865, %v661
        %v869 = vadd.f32 %v862, %v866
        %v870 = vadd.f32 %v863, %v867
        %v871 = vadd.f32 %v864, %v868
        %v875 = vrot.slane %v869, 1
        %v876 = vrot.slane %v870, 1
        %v877 = vsel %vm845, %v875, %v876
        %v878 = vrot.slane %v871, 1
        %v879 = vsel %vm845, %v876, %v878
        %880 = vrot.lane.b32.xlu0 %v877, 127
        %v881 = vpop.permute.xlu0 %880
        %882 = vrot.lane.b32.xlu0 %v879, 127
        %v883 = vpop.permute.xlu0 %882
        %884 = vrot.lane.b32.xlu0 %v878, 127
        %v885 = vpop.permute.xlu0 %884
        %v889 = vadd.f32 %v772, %v881
        %v890 = vadd.f32 %v773, %v883
        %v891 = vadd.f32 %v774, %v885
        %s892 = sld [smem:[#allocation2 + $0x16]]
        %s893 = sld [smem:[#allocation2 + $0x47]]
        %v894 = vstv %s892
        %v895 = vmul.f32 %v894, %v633
        %v896 = vmul.f32 %v894, %v634
        %v897 = vmul.f32 %v894, %v635
        %v898 = vstv %s893
        %v899 = vmul.f32 %v898, %v659
        %v900 = vmul.f32 %v898, %v660
        %v901 = vmul.f32 %v898, %v661
        %v902 = vadd.f32 %v895, %v899
        %v903 = vadd.f32 %v896, %v900
        %v904 = vadd.f32 %v897, %v901
        %v908 = vrot.slane %v902, 1
        %v909 = vrot.slane %v903, 1
        %v910 = vsel %vm845, %v908, %v909
        %v911 = vrot.slane %v904, 1
        %v912 = vsel %vm845, %v909, %v911
        %913 = vrot.lane.b32.xlu0 %v910, 127
        %v914 = vpop.permute.xlu0 %913
        %915 = vrot.lane.b32.xlu0 %v912, 127
        %v916 = vpop.permute.xlu0 %915
        %917 = vrot.lane.b32.xlu0 %v911, 127
        %v918 = vpop.permute.xlu0 %917
        %v922 = vadd.f32 %v799, %v914
        %v923 = vadd.f32 %v800, %v916
        %v924 = vadd.f32 %v801, %v918
        %s925 = sld [smem:[#allocation2 + $0x1d]]
        %s926 = sld [smem:[#allocation2 + $0x4e]]
        %v927 = vstv %s925
        %v928 = vmul.f32 %v927, %v633
        %v929 = vmul.f32 %v927, %v634
        %v930 = vmul.f32 %v927, %v635
        %v931 = vstv %s926
        %v932 = vmul.f32 %v931, %v659
        %v933 = vmul.f32 %v931, %v660
        %v934 = vmul.f32 %v931, %v661
        %v935 = vadd.f32 %v928, %v932
        %v936 = vadd.f32 %v929, %v933
        %v937 = vadd.f32 %v930, %v934
        %v941 = vrot.slane %v935, 1
        %v942 = vrot.slane %v936, 1
        %v943 = vsel %vm845, %v941, %v942
        %v944 = vrot.slane %v937, 1
        %v945 = vsel %vm845, %v942, %v944
        %946 = vrot.lane.b32.xlu0 %v943, 127
        %v947 = vpop.permute.xlu0 %946
        %948 = vrot.lane.b32.xlu0 %v945, 127
        %v949 = vpop.permute.xlu0 %948
        %950 = vrot.lane.b32.xlu0 %v944, 127
        %v951 = vpop.permute.xlu0 %950
        %v955 = vadd.f32 %v826, %v947
        %v956 = vadd.f32 %v827, %v949
        %v957 = vadd.f32 %v828, %v951
        %s958 = sld [smem:[#allocation2 + $0x24]]
        %s959 = sld [smem:[#allocation2 + $0x55]]
        %v960 = vstv %s958
        %v961 = vmul.f32 %v960, %v633
        %v962 = vmul.f32 %v960, %v634
        %v963 = vmul.f32 %v960, %v635
        %v964 = vstv %s959
        %v965 = vmul.f32 %v964, %v659
        %v966 = vmul.f32 %v964, %v660
        %v967 = vmul.f32 %v964, %v661
        %v968 = vadd.f32 %v961, %v965
        %v969 = vadd.f32 %v962, %v966
        %v970 = vadd.f32 %v963, %v967
        %v974 = vrot.slane %v968, 5
        %v975 = vrot.slane %v969, 5
        %v976 = vsel %vm609, %v974, %v975
        %v977 = vrot.slane %v970, 5
        %v978 = vsel %vm609, %v975, %v977
        %979 = vrot.lane.b32.xlu0 %v976, 127
        %v980 = vpop.permute.xlu0 %979
        %981 = vrot.lane.b32.xlu0 %v978, 127
        %v982 = vpop.permute.xlu0 %981
        %v985 = vadd.f32 %v857, %v980
        %v986 = vadd.f32 %v858, %v982
        %s987 = sld [smem:[#allocation2 + $0x2b]]
        %s988 = sld [smem:[#allocation2 + $0x5c]]
        %v989 = vstv %s987
        %v990 = vmul.f32 %v989, %v633
        %v991 = vmul.f32 %v989, %v634
        %v992 = vmul.f32 %v989, %v635
        %v993 = vstv %s988
        %v994 = vmul.f32 %v993, %v659
        %v995 = vmul.f32 %v993, %v660
        %v996 = vmul.f32 %v993, %v661
        %v997 = vadd.f32 %v990, %v994
        %v998 = vadd.f32 %v991, %v995
        %v999 = vadd.f32 %v992, %v996
        %v1003 = vrot.slane %v997, 5
        %v1004 = vrot.slane %v998, 5
        %v1005 = vsel %vm609, %v1003, %v1004
        %v1006 = vrot.slane %v999, 5
        %v1007 = vsel %vm609, %v1004, %v1006
        %1008 = vrot.lane.b32.xlu0 %v1005, 127
        %v1009 = vpop.permute.xlu0 %1008
        %1010 = vrot.lane.b32.xlu0 %v1007, 127
        %v1011 = vpop.permute.xlu0 %1010
        %1012 = vrot.lane.b32.xlu0 %v1006, 127
        %v1013 = vpop.permute.xlu0 %1012
        %v1017 = vadd.f32 %v889, %v1009
        %v1018 = vadd.f32 %v890, %v1011
        %v1019 = vadd.f32 %v891, %v1013
        %s1020 = sld [smem:[#allocation2 + $0x2]]
        %s1021 = sld [smem:[#allocation2 + $0x33]]
        %v1022 = vstv %s1020
        %v1023 = vmul.f32 %v1022, %v633
        %v1024 = vmul.f32 %v1022, %v634
        %v1025 = vstv %s1021
        %v1026 = vmul.f32 %v1025, %v659
        %v1027 = vmul.f32 %v1025, %v660
        %v1028 = vadd.f32 %v1023, %v1026
        %v1029 = vadd.f32 %v1024, %v1027
        %vm1032 = vcmask 1041408
        %v1033 = vrot.slane %v1028, 6
        %v1034 = vrot.slane %v1029, 6
        %v1035 = vsel %vm1032, %v1033, %v1034
        %1036 = vrot.lane.b32.xlu0 %v1033, 126
        %v1037 = vpop.permute.xlu0 %1036
        %1038 = vrot.lane.b32.xlu0 %v1035, 126
        %v1039 = vpop.permute.xlu0 %1038
        %1040 = vrot.lane.b32.xlu0 %v1034, 126
        %v1041 = vpop.permute.xlu0 %1040
        %v1045 = vadd.f32 %v922, %v1037
        %v1046 = vadd.f32 %v923, %v1039
        %v1047 = vadd.f32 %v924, %v1041
        %s1048 = sld [smem:[#allocation2 + $0x9]]
        %s1049 = sld [smem:[#allocation2 + $0x3a]]
        %v1050 = vstv %s1048
        %v1051 = vmul.f32 %v1050, %v633
        %v1052 = vmul.f32 %v1050, %v634
        %v1053 = vmul.f32 %v1050, %v635
        %v1054 = vstv %s1049
        %v1055 = vmul.f32 %v1054, %v659
        %v1056 = vmul.f32 %v1054, %v660
        %v1057 = vmul.f32 %v1054, %v661
        %v1058 = vadd.f32 %v1051, %v1055
        %v1059 = vadd.f32 %v1052, %v1056
        %v1060 = vadd.f32 %v1053, %v1057
        %v1064 = vrot.slane %v1058, 6
        %v1065 = vrot.slane %v1059, 6
        %v1066 = vsel %vm1032, %v1064, %v1065
        %v1067 = vrot.slane %v1060, 6
        %v1068 = vsel %vm1032, %v1065, %v1067
        %1069 = vrot.lane.b32.xlu0 %v1064, 126
        %v1070 = vpop.permute.xlu0 %1069
        %1071 = vrot.lane.b32.xlu0 %v1066, 126
        %v1072 = vpop.permute.xlu0 %1071
        %1073 = vrot.lane.b32.xlu0 %v1068, 126
        %v1074 = vpop.permute.xlu0 %1073
        %v1078 = vadd.f32 %v955, %v1070
        %v1079 = vadd.f32 %v956, %v1072
        %v1080 = vadd.f32 %v957, %v1074
        %s1081 = sld [smem:[#allocation2 + $0x10]]
        %s1082 = sld [smem:[#allocation2 + $0x41]]
        %v1083 = vstv %s1081
        %v1084 = vmul.f32 %v1083, %v633
        %v1085 = vmul.f32 %v1083, %v634
        %v1086 = vmul.f32 %v1083, %v635
        %v1087 = vstv %s1082
        %v1088 = vmul.f32 %v1087, %v659
        %v1089 = vmul.f32 %v1087, %v660
        %v1090 = vmul.f32 %v1087, %v661
        %v1091 = vadd.f32 %v1084, %v1088
        %v1092 = vadd.f32 %v1085, %v1089
        %v1093 = vadd.f32 %v1086, %v1090
        %vm1097 = vcmask 1045504
        %v1098 = vrot.slane %v1091, 2
        %v1099 = vrot.slane %v1092, 2
        %v1100 = vsel %vm1097, %v1098, %v1099
        %v1101 = vrot.slane %v1093, 2
        %v1102 = vsel %vm1097, %v1099, %v1101
        %1103 = vrot.lane.b32.xlu0 %v1100, 126
        %v1104 = vpop.permute.xlu0 %1103
        %1105 = vrot.lane.b32.xlu0 %v1102, 126
        %v1106 = vpop.permute.xlu0 %1105
        %v1109 = vadd.f32 %v985, %v1104
        %v1110 = vadd.f32 %v986, %v1106
        %s1111 = sld [smem:[#allocation2 + $0x17]]
        %s1112 = sld [smem:[#allocation2 + $0x48]]
        %v1113 = vstv %s1111
        %v1114 = vmul.f32 %v1113, %v633
        %v1115 = vmul.f32 %v1113, %v634
        %v1116 = vmul.f32 %v1113, %v635
        %v1117 = vstv %s1112
        %v1118 = vmul.f32 %v1117, %v659
        %v1119 = vmul.f32 %v1117, %v660
        %v1120 = vmul.f32 %v1117, %v661
        %v1121 = vadd.f32 %v1114, %v1118
        %v1122 = vadd.f32 %v1115, %v1119
        %v1123 = vadd.f32 %v1116, %v1120
        %v1127 = vrot.slane %v1121, 2
        %v1128 = vrot.slane %v1122, 2
        %v1129 = vsel %vm1097, %v1127, %v1128
        %v1130 = vrot.slane %v1123, 2
        %v1131 = vsel %vm1097, %v1128, %v1130
        %1132 = vrot.lane.b32.xlu0 %v1129, 126
        %v1133 = vpop.permute.xlu0 %1132
        %1134 = vrot.lane.b32.xlu0 %v1131, 126
        %v1135 = vpop.permute.xlu0 %1134
        %1136 = vrot.lane.b32.xlu0 %v1130, 126
        %v1137 = vpop.permute.xlu0 %1136
        %v1141 = vadd.f32 %v1017, %v1133
        %v1142 = vadd.f32 %v1018, %v1135
        %v1143 = vadd.f32 %v1019, %v1137
        %s1144 = sld [smem:[#allocation2 + $0x1e]]
        %s1145 = sld [smem:[#allocation2 + $0x4f]]
        %v1146 = vstv %s1144
        %v1147 = vmul.f32 %v1146, %v633
        %v1148 = vmul.f32 %v1146, %v634
        %v1149 = vmul.f32 %v1146, %v635
        %v1150 = vstv %s1145
        %v1151 = vmul.f32 %v1150, %v659
        %v1152 = vmul.f32 %v1150, %v660
        %v1153 = vmul.f32 %v1150, %v661
        %v1154 = vadd.f32 %v1147, %v1151
        %v1155 = vadd.f32 %v1148, %v1152
        %v1156 = vadd.f32 %v1149, %v1153
        %v1160 = vrot.slane %v1154, 2
        %v1161 = vrot.slane %v1155, 2
        %v1162 = vsel %vm1097, %v1160, %v1161
        %v1163 = vrot.slane %v1156, 2
        %v1164 = vsel %vm1097, %v1161, %v1163
        %1165 = vrot.lane.b32.xlu0 %v1162, 126
        %v1166 = vpop.permute.xlu0 %1165
        %1167 = vrot.lane.b32.xlu0 %v1164, 126
        %v1168 = vpop.permute.xlu0 %1167
        %1169 = vrot.lane.b32.xlu0 %v1163, 126
        %v1170 = vpop.permute.xlu0 %1169
        %v1174 = vadd.f32 %v1045, %v1166
        %v1175 = vadd.f32 %v1046, %v1168
        %v1176 = vadd.f32 %v1047, %v1170
        %s1177 = sld [smem:[#allocation2 + $0x25]]
        %s1178 = sld [smem:[#allocation2 + $0x56]]
        %v1179 = vstv %s1177
        %v1180 = vmul.f32 %v1179, %v633
        %v1181 = vmul.f32 %v1179, %v634
        %v1182 = vmul.f32 %v1179, %v635
        %v1183 = vstv %s1178
        %v1184 = vmul.f32 %v1183, %v659
        %v1185 = vmul.f32 %v1183, %v660
        %v1186 = vmul.f32 %v1183, %v661
        %v1187 = vadd.f32 %v1180, %v1184
        %v1188 = vadd.f32 %v1181, %v1185
        %v1189 = vadd.f32 %v1182, %v1186
        %v1193 = vrot.slane %v1187, 2
        %v1194 = vrot.slane %v1188, 2
        %v1195 = vsel %vm1097, %v1193, %v1194
        %v1196 = vrot.slane %v1189, 2
        %v1197 = vsel %vm1097, %v1194, %v1196
        %1198 = vrot.lane.b32.xlu0 %v1195, 126
        %v1199 = vpop.permute.xlu0 %1198
        %1200 = vrot.lane.b32.xlu0 %v1197, 126
        %v1201 = vpop.permute.xlu0 %1200
        %1202 = vrot.lane.b32.xlu0 %v1196, 126
        %v1203 = vpop.permute.xlu0 %1202
        %v1207 = vadd.f32 %v1078, %v1199
        %v1208 = vadd.f32 %v1079, %v1201
        %v1209 = vadd.f32 %v1080, %v1203
        %s1210 = sld [smem:[#allocation2 + $0x2c]]
        %s1211 = sld [smem:[#allocation2 + $0x5d]]
        %v1212 = vstv %s1210
        %v1213 = vmul.f32 %v1212, %v633
        %v1214 = vmul.f32 %v1212, %v634
        %v1215 = vmul.f32 %v1212, %v635
        %v1216 = vstv %s1211
        %v1217 = vmul.f32 %v1216, %v659
        %v1218 = vmul.f32 %v1216, %v660
        %v1219 = vmul.f32 %v1216, %v661
        %v1220 = vadd.f32 %v1213, %v1217
        %v1221 = vadd.f32 %v1214, %v1218
        %v1222 = vadd.f32 %v1215, %v1219
        %v1226 = vrot.slane %v1220, 6
        %v1227 = vrot.slane %v1221, 6
        %v1228 = vsel %vm1032, %v1226, %v1227
        %v1229 = vrot.slane %v1222, 6
        %v1230 = vsel %vm1032, %v1227, %v1229
        %1231 = vrot.lane.b32.xlu0 %v1228, 126
        %v1232 = vpop.permute.xlu0 %1231
        %1233 = vrot.lane.b32.xlu0 %v1230, 126
        %v1234 = vpop.permute.xlu0 %1233
        %v1237 = vadd.f32 %v1109, %v1232
        %v1238 = vadd.f32 %v1110, %v1234
        %s1239 = sld [smem:[#allocation2 + $0x3]]
        %s1240 = sld [smem:[#allocation2 + $0x34]]
        %v1241 = vstv %s1239
        %v1242 = vmul.f32 %v1241, %v633
        %v1243 = vmul.f32 %v1241, %v634
        %v1244 = vstv %s1240
        %v1245 = vmul.f32 %v1244, %v659
        %v1246 = vmul.f32 %v1244, %v660
        %v1247 = vadd.f32 %v1242, %v1245
        %v1248 = vadd.f32 %v1243, %v1246
        %vm1251 = vcmask 1040384
        %v1252 = vrot.slane %v1247, 7
        %v1253 = vrot.slane %v1248, 7
        %v1254 = vsel %vm1251, %v1252, %v1253
        %1255 = vrot.lane.b32.xlu0 %v1252, 125
        %v1256 = vpop.permute.xlu0 %1255
        %1257 = vrot.lane.b32.xlu0 %v1254, 125
        %v1258 = vpop.permute.xlu0 %1257
        %1259 = vrot.lane.b32.xlu0 %v1253, 125
        %v1260 = vpop.permute.xlu0 %1259
        %v1264 = vadd.f32 %v1141, %v1256
        %v1265 = vadd.f32 %v1142, %v1258
        %v1266 = vadd.f32 %v1143, %v1260
        %s1267 = sld [smem:[#allocation2 + $0xa]]
        %s1268 = sld [smem:[#allocation2 + $0x3b]]
        %v1269 = vstv %s1267
        %v1270 = vmul.f32 %v1269, %v633
        %v1271 = vmul.f32 %v1269, %v634
        %v1272 = vmul.f32 %v1269, %v635
        %v1273 = vstv %s1268
        %v1274 = vmul.f32 %v1273, %v659
        %v1275 = vmul.f32 %v1273, %v660
        %v1276 = vmul.f32 %v1273, %v661
        %v1277 = vadd.f32 %v1270, %v1274
        %v1278 = vadd.f32 %v1271, %v1275
        %v1279 = vadd.f32 %v1272, %v1276
        %v1283 = vrot.slane %v1277, 7
        %v1284 = vrot.slane %v1278, 7
        %v1285 = vsel %vm1251, %v1283, %v1284
        %v1286 = vrot.slane %v1279, 7
        %v1287 = vsel %vm1251, %v1284, %v1286
        %1288 = vrot.lane.b32.xlu0 %v1283, 125
        %v1289 = vpop.permute.xlu0 %1288
        %1290 = vrot.lane.b32.xlu0 %v1285, 125
        %v1291 = vpop.permute.xlu0 %1290
        %1292 = vrot.lane.b32.xlu0 %v1287, 125
        %v1293 = vpop.permute.xlu0 %1292
        %v1297 = vadd.f32 %v1174, %v1289
        %v1298 = vadd.f32 %v1175, %v1291
        %v1299 = vadd.f32 %v1176, %v1293
        %s1300 = sld [smem:[#allocation2 + $0x11]]
        %s1301 = sld [smem:[#allocation2 + $0x42]]
        %v1302 = vstv %s1300
        %v1303 = vmul.f32 %v1302, %v633
        %v1304 = vmul.f32 %v1302, %v634
        %v1305 = vmul.f32 %v1302, %v635
        %v1306 = vstv %s1301
        %v1307 = vmul.f32 %v1306, %v659
        %v1308 = vmul.f32 %v1306, %v660
        %v1309 = vmul.f32 %v1306, %v661
        %v1310 = vadd.f32 %v1303, %v1307
        %v1311 = vadd.f32 %v1304, %v1308
        %v1312 = vadd.f32 %v1305, %v1309
        %v1316 = vrot.slane %v1310, 7
        %v1317 = vrot.slane %v1311, 7
        %v1318 = vsel %vm1251, %v1316, %v1317
        %v1319 = vrot.slane %v1312, 7
        %v1320 = vsel %vm1251, %v1317, %v1319
        %1321 = vrot.lane.b32.xlu0 %v1316, 125
        %v1322 = vpop.permute.xlu0 %1321
        %1323 = vrot.lane.b32.xlu0 %v1318, 125
        %v1324 = vpop.permute.xlu0 %1323
        %1325 = vrot.lane.b32.xlu0 %v1320, 125
        %v1326 = vpop.permute.xlu0 %1325
        %v1330 = vadd.f32 %v1207, %v1322
        %v1331 = vadd.f32 %v1208, %v1324
        %v1332 = vadd.f32 %v1209, %v1326
        %s1333 = sld [smem:[#allocation2 + $0x18]]
        %s1334 = sld [smem:[#allocation2 + $0x49]]
        %v1335 = vstv %s1333
        %v1336 = vmul.f32 %v1335, %v633
        %v1337 = vmul.f32 %v1335, %v634
        %v1338 = vmul.f32 %v1335, %v635
        %v1339 = vstv %s1334
        %v1340 = vmul.f32 %v1339, %v659
        %v1341 = vmul.f32 %v1339, %v660
        %v1342 = vmul.f32 %v1339, %v661
        %v1343 = vadd.f32 %v1336, %v1340
        %v1344 = vadd.f32 %v1337, %v1341
        %v1345 = vadd.f32 %v1338, %v1342
        %vm1349 = vcmask 1044480
        %v1350 = vrot.slane %v1343, 3
        %v1351 = vrot.slane %v1344, 3
        %v1352 = vsel %vm1349, %v1350, %v1351
        %v1353 = vrot.slane %v1345, 3
        %v1354 = vsel %vm1349, %v1351, %v1353
        %1355 = vrot.lane.b32.xlu0 %v1352, 125
        %v1356 = vpop.permute.xlu0 %1355
        %1357 = vrot.lane.b32.xlu0 %v1354, 125
        %v1358 = vpop.permute.xlu0 %1357
        %v1361 = vadd.f32 %v1237, %v1356
        %v1362 = vadd.f32 %v1238, %v1358
        %s1363 = sld [smem:[#allocation2 + $0x1f]]
        %s1364 = sld [smem:[#allocation2 + $0x50]]
        %v1365 = vstv %s1363
        %v1366 = vmul.f32 %v1365, %v633
        %v1367 = vmul.f32 %v1365, %v634
        %v1368 = vmul.f32 %v1365, %v635
        %v1369 = vstv %s1364
        %v1370 = vmul.f32 %v1369, %v659
        %v1371 = vmul.f32 %v1369, %v660
        %v1372 = vmul.f32 %v1369, %v661
        %v1373 = vadd.f32 %v1366, %v1370
        %v1374 = vadd.f32 %v1367, %v1371
        %v1375 = vadd.f32 %v1368, %v1372
        %v1379 = vrot.slane %v1373, 3
        %v1380 = vrot.slane %v1374, 3
        %v1381 = vsel %vm1349, %v1379, %v1380
        %v1382 = vrot.slane %v1375, 3
        %v1383 = vsel %vm1349, %v1380, %v1382
        %1384 = vrot.lane.b32.xlu0 %v1381, 125
        %v1385 = vpop.permute.xlu0 %1384
        %1386 = vrot.lane.b32.xlu0 %v1383, 125
        %v1387 = vpop.permute.xlu0 %1386
        %1388 = vrot.lane.b32.xlu0 %v1382, 125
        %v1389 = vpop.permute.xlu0 %1388
        %v1393 = vadd.f32 %v1264, %v1385
        %v1394 = vadd.f32 %v1265, %v1387
        %v1395 = vadd.f32 %v1266, %v1389
        %s1396 = sld [smem:[#allocation2 + $0x26]]
        %s1397 = sld [smem:[#allocation2 + $0x57]]
        %v1398 = vstv %s1396
        %v1399 = vmul.f32 %v1398, %v633
        %v1400 = vmul.f32 %v1398, %v634
        %v1401 = vmul.f32 %v1398, %v635
        %v1402 = vstv %s1397
        %v1403 = vmul.f32 %v1402, %v659
        %v1404 = vmul.f32 %v1402, %v660
        %v1405 = vmul.f32 %v1402, %v661
        %v1406 = vadd.f32 %v1399, %v1403
        %v1407 = vadd.f32 %v1400, %v1404
        %v1408 = vadd.f32 %v1401, %v1405
        %v1412 = vrot.slane %v1406, 3
        %v1413 = vrot.slane %v1407, 3
        %v1414 = vsel %vm1349, %v1412, %v1413
        %v1415 = vrot.slane %v1408, 3
        %v1416 = vsel %vm1349, %v1413, %v1415
        %1417 = vrot.lane.b32.xlu0 %v1414, 125
        %v1418 = vpop.permute.xlu0 %1417
        %1419 = vrot.lane.b32.xlu0 %v1416, 125
        %v1420 = vpop.permute.xlu0 %1419
        %1421 = vrot.lane.b32.xlu0 %v1415, 125
        %v1422 = vpop.permute.xlu0 %1421
        %v1426 = vadd.f32 %v1297, %v1418
        %v1427 = vadd.f32 %v1298, %v1420
        %v1428 = vadd.f32 %v1299, %v1422
        %s1429 = sld [smem:[#allocation2 + $0x2d]]
        %s1430 = sld [smem:[#allocation2 + $0x5e]]
        %v1431 = vstv %s1429
        %v1432 = vmul.f32 %v1431, %v633
        %v1433 = vmul.f32 %v1431, %v634
        %v1434 = vmul.f32 %v1431, %v635
        %v1435 = vstv %s1430
        %v1436 = vmul.f32 %v1435, %v659
        %v1437 = vmul.f32 %v1435, %v660
        %v1438 = vmul.f32 %v1435, %v661
        %v1439 = vadd.f32 %v1432, %v1436
        %v1440 = vadd.f32 %v1433, %v1437
        %v1441 = vadd.f32 %v1434, %v1438
        %v1445 = vrot.slane %v1439, 3
        %v1446 = vrot.slane %v1440, 3
        %v1447 = vsel %vm1349, %v1445, %v1446
        %v1448 = vrot.slane %v1441, 3
        %v1449 = vsel %vm1349, %v1446, %v1448
        %1450 = vrot.lane.b32.xlu0 %v1447, 125
        %v1451 = vpop.permute.xlu0 %1450
        %1452 = vrot.lane.b32.xlu0 %v1449, 125
        %v1453 = vpop.permute.xlu0 %1452
        %1454 = vrot.lane.b32.xlu0 %v1448, 125
        %v1455 = vpop.permute.xlu0 %1454
        %v1459 = vadd.f32 %v1330, %v1451
        %v1460 = vadd.f32 %v1331, %v1453
        %v1461 = vadd.f32 %v1332, %v1455
        %s1462 = sld [smem:[#allocation2 + $0x4]]
        %s1463 = sld [smem:[#allocation2 + $0x35]]
        %v1464 = vstv %s1462
        %v1465 = vmul.f32 %v1464, %v633
        %v1466 = vmul.f32 %v1464, %v634
        %v1467 = vstv %s1463
        %v1468 = vmul.f32 %v1467, %v659
        %v1469 = vmul.f32 %v1467, %v660
        %v1470 = vadd.f32 %v1465, %v1468
        %v1471 = vadd.f32 %v1466, %v1469
        %1474 = vrot.lane.b32.xlu0 %v1470, 124
        %v1475 = vpop.permute.xlu0 %1474
        %1476 = vrot.lane.b32.xlu0 %v1471, 124
        %v1477 = vpop.permute.xlu0 %1476
        %v1480 = vadd.f32 %v1361, %v1475
        %v1481 = vadd.f32 %v1362, %v1477
        %s1482 = sld [smem:[#allocation2 + $0xb]]
        %s1483 = sld [smem:[#allocation2 + $0x3c]]
        %v1484 = vstv %s1482
        %v1485 = vmul.f32 %v1484, %v633
        %v1486 = vmul.f32 %v1484, %v634
        %v1487 = vmul.f32 %v1484, %v635
        %v1488 = vstv %s1483
        %v1489 = vmul.f32 %v1488, %v659
        %v1490 = vmul.f32 %v1488, %v660
        %v1491 = vmul.f32 %v1488, %v661
        %v1492 = vadd.f32 %v1485, %v1489
        %v1493 = vadd.f32 %v1486, %v1490
        %v1494 = vadd.f32 %v1487, %v1491
        %1498 = vrot.lane.b32.xlu0 %v1492, 124
        %v1499 = vpop.permute.xlu0 %1498
        %1500 = vrot.lane.b32.xlu0 %v1493, 124
        %v1501 = vpop.permute.xlu0 %1500
        %1502 = vrot.lane.b32.xlu0 %v1494, 124
        %v1503 = vpop.permute.xlu0 %1502
        %v1507 = vadd.f32 %v1393, %v1499
        %v1508 = vadd.f32 %v1394, %v1501
        %v1509 = vadd.f32 %v1395, %v1503
        %s1510 = sld [smem:[#allocation2 + $0x12]]
        %s1511 = sld [smem:[#allocation2 + $0x43]]
        %v1512 = vstv %s1510
        %v1513 = vmul.f32 %v1512, %v633
        %v1514 = vmul.f32 %v1512, %v634
        %v1515 = vmul.f32 %v1512, %v635
        %v1516 = vstv %s1511
        %v1517 = vmul.f32 %v1516, %v659
        %v1518 = vmul.f32 %v1516, %v660
        %v1519 = vmul.f32 %v1516, %v661
        %v1520 = vadd.f32 %v1513, %v1517
        %v1521 = vadd.f32 %v1514, %v1518
        %v1522 = vadd.f32 %v1515, %v1519
        %1526 = vrot.lane.b32.xlu0 %v1520, 124
        %v1527 = vpop.permute.xlu0 %1526
        %1528 = vrot.lane.b32.xlu0 %v1521, 124
        %v1529 = vpop.permute.xlu0 %1528
        %1530 = vrot.lane.b32.xlu0 %v1522, 124
        %v1531 = vpop.permute.xlu0 %1530
        %v1535 = vadd.f32 %v1426, %v1527
        %v1536 = vadd.f32 %v1427, %v1529
        %v1537 = vadd.f32 %v1428, %v1531
        %s1538 = sld [smem:[#allocation2 + $0x19]]
        %s1539 = sld [smem:[#allocation2 + $0x4a]]
        %v1540 = vstv %s1538
        %v1541 = vmul.f32 %v1540, %v633
        %v1542 = vmul.f32 %v1540, %v634
        %v1543 = vmul.f32 %v1540, %v635
        %v1544 = vstv %s1539
        %v1545 = vmul.f32 %v1544, %v659
        %v1546 = vmul.f32 %v1544, %v660
        %v1547 = vmul.f32 %v1544, %v661
        %v1548 = vadd.f32 %v1541, %v1545
        %v1549 = vadd.f32 %v1542, %v1546
        %v1550 = vadd.f32 %v1543, %v1547
        %1554 = vrot.lane.b32.xlu0 %v1548, 124
        %v1555 = vpop.permute.xlu0 %1554
        %1556 = vrot.lane.b32.xlu0 %v1549, 124
        %v1557 = vpop.permute.xlu0 %1556
        %1558 = vrot.lane.b32.xlu0 %v1550, 124
        %v1559 = vpop.permute.xlu0 %1558
        %v1563 = vadd.f32 %v1459, %v1555
        %v1564 = vadd.f32 %v1460, %v1557
        %v1565 = vadd.f32 %v1461, %v1559
        %s1566 = sld [smem:[#allocation2 + $0x20]]
        %s1567 = sld [smem:[#allocation2 + $0x51]]
        %v1568 = vstv %s1566
        %v1569 = vmul.f32 %v1568, %v633
        %v1570 = vmul.f32 %v1568, %v634
        %v1571 = vmul.f32 %v1568, %v635
        %v1572 = vstv %s1567
        %v1573 = vmul.f32 %v1572, %v659
        %v1574 = vmul.f32 %v1572, %v660
        %v1575 = vmul.f32 %v1572, %v661
        %v1576 = vadd.f32 %v1569, %v1573
        %v1577 = vadd.f32 %v1570, %v1574
        %v1578 = vadd.f32 %v1571, %v1575
        %v1582 = vrot.slane %v1576, 4
        %v1583 = vrot.slane %v1577, 4
        %v1584 = vsel %vm738, %v1582, %v1583
        %v1585 = vrot.slane %v1578, 4
        %v1586 = vsel %vm738, %v1583, %v1585
        %1587 = vrot.lane.b32.xlu0 %v1584, 124
        %v1588 = vpop.permute.xlu0 %1587
        %1589 = vrot.lane.b32.xlu0 %v1586, 124
        %v1590 = vpop.permute.xlu0 %1589
        %v1593 = vadd.f32 %v1480, %v1588
        %v1594 = vadd.f32 %v1481, %v1590
        %s1595 = sld [smem:[#allocation2 + $0x27]]
        %s1596 = sld [smem:[#allocation2 + $0x58]]
        %v1597 = vstv %s1595
        %v1598 = vmul.f32 %v1597, %v633
        %v1599 = vmul.f32 %v1597, %v634
        %v1600 = vmul.f32 %v1597, %v635
        %v1601 = vstv %s1596
        %v1602 = vmul.f32 %v1601, %v659
        %v1603 = vmul.f32 %v1601, %v660
        %v1604 = vmul.f32 %v1601, %v661
        %v1605 = vadd.f32 %v1598, %v1602
        %v1606 = vadd.f32 %v1599, %v1603
        %v1607 = vadd.f32 %v1600, %v1604
        %v1611 = vrot.slane %v1605, 4
        %v1612 = vrot.slane %v1606, 4
        %v1613 = vsel %vm738, %v1611, %v1612
        %v1614 = vrot.slane %v1607, 4
        %v1615 = vsel %vm738, %v1612, %v1614
        %1616 = vrot.lane.b32.xlu0 %v1613, 124
        %v1617 = vpop.permute.xlu0 %1616
        %1618 = vrot.lane.b32.xlu0 %v1615, 124
        %v1619 = vpop.permute.xlu0 %1618
        %1620 = vrot.lane.b32.xlu0 %v1614, 124
        %v1621 = vpop.permute.xlu0 %1620
        %v1625 = vadd.f32 %v1507, %v1617
        %v1626 = vadd.f32 %v1508, %v1619
        %v1627 = vadd.f32 %v1509, %v1621
        %s1628 = sld [smem:[#allocation2 + $0x2e]]
        %s1629 = sld [smem:[#allocation2 + $0x5f]]
        %v1630 = vstv %s1628
        %v1631 = vmul.f32 %v1630, %v633
        %v1632 = vmul.f32 %v1630, %v634
        %v1633 = vmul.f32 %v1630, %v635
        %v1634 = vstv %s1629
        %v1635 = vmul.f32 %v1634, %v659
        %v1636 = vmul.f32 %v1634, %v660
        %v1637 = vmul.f32 %v1634, %v661
        %v1638 = vadd.f32 %v1631, %v1635
        %v1639 = vadd.f32 %v1632, %v1636
        %v1640 = vadd.f32 %v1633, %v1637
        %v1644 = vrot.slane %v1638, 4
        %v1645 = vrot.slane %v1639, 4
        %v1646 = vsel %vm738, %v1644, %v1645
        %v1647 = vrot.slane %v1640, 4
        %v1648 = vsel %vm738, %v1645, %v1647
        %1649 = vrot.lane.b32.xlu0 %v1646, 124
        %v1650 = vpop.permute.xlu0 %1649
        %1651 = vrot.lane.b32.xlu0 %v1648, 124
        %v1652 = vpop.permute.xlu0 %1651
        %1653 = vrot.lane.b32.xlu0 %v1647, 124
        %v1654 = vpop.permute.xlu0 %1653
        %v1658 = vadd.f32 %v1535, %v1650
        %v1659 = vadd.f32 %v1536, %v1652
        %v1660 = vadd.f32 %v1537, %v1654
        %s1661 = sld [smem:[#allocation2 + $0x5]]
        %s1662 = sld [smem:[#allocation2 + $0x36]]
        %v1663 = vstv %s1661
        %v1664 = vmul.f32 %v1663, %v633
        %v1665 = vmul.f32 %v1663, %v634
        %v1666 = vstv %s1662
        %v1667 = vmul.f32 %v1666, %v659
        %v1668 = vmul.f32 %v1666, %v660
        %v1669 = vadd.f32 %v1664, %v1667
        %v1670 = vadd.f32 %v1665, %v1668
        %v1673 = vrot.slane %v1669, 5
        %v1674 = vrot.slane %v1670, 5
        %v1675 = vsel %vm609, %v1673, %v1674
        %1676 = vrot.lane.b32.xlu0 %v1673, 123
        %v1677 = vpop.permute.xlu0 %1676
        %1678 = vrot.lane.b32.xlu0 %v1675, 123
        %v1679 = vpop.permute.xlu0 %1678
        %1680 = vrot.lane.b32.xlu0 %v1674, 123
        %v1681 = vpop.permute.xlu0 %1680
        %v1685 = vadd.f32 %v1563, %v1677
        %v1686 = vadd.f32 %v1564, %v1679
        %v1687 = vadd.f32 %v1565, %v1681
        %s1688 = sld [smem:[#allocation2 + $0xc]]
        %s1689 = sld [smem:[#allocation2 + $0x3d]]
        %v1690 = vstv %s1688
        %v1691 = vmul.f32 %v1690, %v633
        %v1692 = vmul.f32 %v1690, %v634
        %v1693 = vmul.f32 %v1690, %v635
        %v1694 = vstv %s1689
        %v1695 = vmul.f32 %v1694, %v659
        %v1696 = vmul.f32 %v1694, %v660
        %v1697 = vmul.f32 %v1694, %v661
        %v1698 = vadd.f32 %v1691, %v1695
        %v1699 = vadd.f32 %v1692, %v1696
        %v1700 = vadd.f32 %v1693, %v1697
        %v1704 = vrot.slane %v1698, 1
        %v1705 = vrot.slane %v1699, 1
        %v1706 = vsel %vm845, %v1704, %v1705
        %v1707 = vrot.slane %v1700, 1
        %v1708 = vsel %vm845, %v1705, %v1707
        %1709 = vrot.lane.b32.xlu0 %v1706, 123
        %v1710 = vpop.permute.xlu0 %1709
        %1711 = vrot.lane.b32.xlu0 %v1708, 123
        %v1712 = vpop.permute.xlu0 %1711
        %v1715 = vadd.f32 %v1593, %v1710
        %v1716 = vadd.f32 %v1594, %v1712
        %s1717 = sld [smem:[#allocation2 + $0x13]]
        %s1718 = sld [smem:[#allocation2 + $0x44]]
        %v1719 = vstv %s1717
        %v1720 = vmul.f32 %v1719, %v633
        %v1721 = vmul.f32 %v1719, %v634
        %v1722 = vmul.f32 %v1719, %v635
        %v1723 = vstv %s1718
        %v1724 = vmul.f32 %v1723, %v659
        %v1725 = vmul.f32 %v1723, %v660
        %v1726 = vmul.f32 %v1723, %v661
        %v1727 = vadd.f32 %v1720, %v1724
        %v1728 = vadd.f32 %v1721, %v1725
        %v1729 = vadd.f32 %v1722, %v1726
        %v1733 = vrot.slane %v1727, 1
        %v1734 = vrot.slane %v1728, 1
        %v1735 = vsel %vm845, %v1733, %v1734
        %v1736 = vrot.slane %v1729, 1
        %v1737 = vsel %vm845, %v1734, %v1736
        %1738 = vrot.lane.b32.xlu0 %v1735, 123
        %v1739 = vpop.permute.xlu0 %1738
        %1740 = vrot.lane.b32.xlu0 %v1737, 123
        %v1741 = vpop.permute.xlu0 %1740
        %1742 = vrot.lane.b32.xlu0 %v1736, 123
        %v1743 = vpop.permute.xlu0 %1742
        %v1747 = vadd.f32 %v1625, %v1739
        %v1748 = vadd.f32 %v1626, %v1741
        %v1749 = vadd.f32 %v1627, %v1743
        %s1750 = sld [smem:[#allocation2 + $0x1a]]
        %s1751 = sld [smem:[#allocation2 + $0x4b]]
        %v1752 = vstv %s1750
        %v1753 = vmul.f32 %v1752, %v633
        %v1754 = vmul.f32 %v1752, %v634
        %v1755 = vmul.f32 %v1752, %v635
        %v1756 = vstv %s1751
        %v1757 = vmul.f32 %v1756, %v659
        %v1758 = vmul.f32 %v1756, %v660
        %v1759 = vmul.f32 %v1756, %v661
        %v1760 = vadd.f32 %v1753, %v1757
        %v1761 = vadd.f32 %v1754, %v1758
        %v1762 = vadd.f32 %v1755, %v1759
        %v1766 = vrot.slane %v1760, 1
        %v1767 = vrot.slane %v1761, 1
        %v1768 = vsel %vm845, %v1766, %v1767
        %v1769 = vrot.slane %v1762, 1
        %v1770 = vsel %vm845, %v1767, %v1769
        %1771 = vrot.lane.b32.xlu0 %v1768, 123
        %v1772 = vpop.permute.xlu0 %1771
        %1773 = vrot.lane.b32.xlu0 %v1770, 123
        %v1774 = vpop.permute.xlu0 %1773
        %1775 = vrot.lane.b32.xlu0 %v1769, 123
        %v1776 = vpop.permute.xlu0 %1775
        %v1780 = vadd.f32 %v1658, %v1772
        %v1781 = vadd.f32 %v1659, %v1774
        %v1782 = vadd.f32 %v1660, %v1776
        %s1783 = sld [smem:[#allocation2 + $0x21]]
        %s1784 = sld [smem:[#allocation2 + $0x52]]
        %v1785 = vstv %s1783
        %v1786 = vmul.f32 %v1785, %v633
        %v1787 = vmul.f32 %v1785, %v634
        %v1788 = vmul.f32 %v1785, %v635
        %v1789 = vstv %s1784
        %v1790 = vmul.f32 %v1789, %v659
        %v1791 = vmul.f32 %v1789, %v660
        %v1792 = vmul.f32 %v1789, %v661
        %v1793 = vadd.f32 %v1786, %v1790
        %v1794 = vadd.f32 %v1787, %v1791
        %v1795 = vadd.f32 %v1788, %v1792
        %v1799 = vrot.slane %v1793, 1
        %v1800 = vrot.slane %v1794, 1
        %v1801 = vsel %vm845, %v1799, %v1800
        %v1802 = vrot.slane %v1795, 1
        %v1803 = vsel %vm845, %v1800, %v1802
        %1804 = vrot.lane.b32.xlu0 %v1801, 123
        %v1805 = vpop.permute.xlu0 %1804
        %1806 = vrot.lane.b32.xlu0 %v1803, 123
        %v1807 = vpop.permute.xlu0 %1806
        %1808 = vrot.lane.b32.xlu0 %v1802, 123
        %v1809 = vpop.permute.xlu0 %1808
        %v1813 = vadd.f32 %v1685, %v1805
        %v1814 = vadd.f32 %v1686, %v1807
        %v1815 = vadd.f32 %v1687, %v1809
        %s1816 = sld [smem:[#allocation2 + $0x28]]
        %s1817 = sld [smem:[#allocation2 + $0x59]]
        %v1818 = vstv %s1816
        %v1819 = vmul.f32 %v1818, %v633
        %v1820 = vmul.f32 %v1818, %v634
        %v1821 = vmul.f32 %v1818, %v635
        %v1822 = vstv %s1817
        %v1823 = vmul.f32 %v1822, %v659
        %v1824 = vmul.f32 %v1822, %v660
        %v1825 = vmul.f32 %v1822, %v661
        %v1826 = vadd.f32 %v1819, %v1823
        %v1827 = vadd.f32 %v1820, %v1824
        %v1828 = vadd.f32 %v1821, %v1825
        %v1832 = vrot.slane %v1826, 5
        %v1833 = vrot.slane %v1827, 5
        %v1834 = vsel %vm609, %v1832, %v1833
        %v1835 = vrot.slane %v1828, 5
        %v1836 = vsel %vm609, %v1833, %v1835
        %1837 = vrot.lane.b32.xlu0 %v1834, 123
        %v1838 = vpop.permute.xlu0 %1837
        %1839 = vrot.lane.b32.xlu0 %v1836, 123
        %v1840 = vpop.permute.xlu0 %1839
        %v1843 = vadd.f32 %v1715, %v1838
        %v1844 = vadd.f32 %v1716, %v1840
        %s1845 = sld [smem:[#allocation2 + $0x2f]]
        %s1846 = sld [smem:[#allocation2 + $0x60]]
        %v1847 = vstv %s1845
        %v1848 = vmul.f32 %v1847, %v633
        %v1849 = vmul.f32 %v1847, %v634
        %v1850 = vmul.f32 %v1847, %v635
        %v1851 = vstv %s1846
        %v1852 = vmul.f32 %v1851, %v659
        %v1853 = vmul.f32 %v1851, %v660
        %v1854 = vmul.f32 %v1851, %v661
        %v1855 = vadd.f32 %v1848, %v1852
        %v1856 = vadd.f32 %v1849, %v1853
        %v1857 = vadd.f32 %v1850, %v1854
        %v1861 = vrot.slane %v1855, 5
        %v1862 = vrot.slane %v1856, 5
        %v1863 = vsel %vm609, %v1861, %v1862
        %v1864 = vrot.slane %v1857, 5
        %v1865 = vsel %vm609, %v1862, %v1864
        %1866 = vrot.lane.b32.xlu0 %v1863, 123
        %v1867 = vpop.permute.xlu0 %1866
        %1868 = vrot.lane.b32.xlu0 %v1865, 123
        %v1869 = vpop.permute.xlu0 %1868
        %1870 = vrot.lane.b32.xlu0 %v1864, 123
        %v1871 = vpop.permute.xlu0 %1870
        %v1875 = vadd.f32 %v1747, %v1867
        %v1876 = vadd.f32 %v1748, %v1869
        %v1877 = vadd.f32 %v1749, %v1871
        %s1878 = sld [smem:[#allocation2 + $0x6]]
        %s1879 = sld [smem:[#allocation2 + $0x37]]
        %v1880 = vstv %s1878
        %v1881 = vmul.f32 %v1880, %v633
        %v1882 = vmul.f32 %v1880, %v634
        %v1883 = vstv %s1879
        %v1884 = vmul.f32 %v1883, %v659
        %v1885 = vmul.f32 %v1883, %v660
        %v1886 = vadd.f32 %v1881, %v1884
        %v1887 = vadd.f32 %v1882, %v1885
        %v1890 = vrot.slane %v1886, 6
        %v1891 = vrot.slane %v1887, 6
        %v1892 = vsel %vm1032, %v1890, %v1891
        %1893 = vrot.lane.b32.xlu0 %v1890, 122
        %v1894 = vpop.permute.xlu0 %1893
        %1895 = vrot.lane.b32.xlu0 %v1892, 122
        %v1896 = vpop.permute.xlu0 %1895
        %1897 = vrot.lane.b32.xlu0 %v1891, 122
        %v1898 = vpop.permute.xlu0 %1897
        %v1902 = vadd.f32 %v1780, %v1894
        %v1903 = vadd.f32 %v1781, %v1896
        %v1904 = vadd.f32 %v1782, %v1898
        %s1905 = sld [smem:[#allocation2 + $0xd]]
        %s1906 = sld [smem:[#allocation2 + $0x3e]]
        %v1907 = vstv %s1905
        %v1908 = vmul.f32 %v1907, %v633
        %v1909 = vmul.f32 %v1907, %v634
        %v1910 = vmul.f32 %v1907, %v635
        %v1911 = vstv %s1906
        %v1912 = vmul.f32 %v1911, %v659
        %v1913 = vmul.f32 %v1911, %v660
        %v1914 = vmul.f32 %v1911, %v661
        %v1915 = vadd.f32 %v1908, %v1912
        %v1916 = vadd.f32 %v1909, %v1913
        %v1917 = vadd.f32 %v1910, %v1914
        %v1921 = vrot.slane %v1915, 6
        %v1922 = vrot.slane %v1916, 6
        %v1923 = vsel %vm1032, %v1921, %v1922
        %v1924 = vrot.slane %v1917, 6
        %v1925 = vsel %vm1032, %v1922, %v1924
        %1926 = vrot.lane.b32.xlu0 %v1921, 122
        %v1927 = vpop.permute.xlu0 %1926
        %1928 = vrot.lane.b32.xlu0 %v1923, 122
        %v1929 = vpop.permute.xlu0 %1928
        %1930 = vrot.lane.b32.xlu0 %v1925, 122
        %v1931 = vpop.permute.xlu0 %1930
        %v1935 = vadd.f32 %v1813, %v1927
        %v1936 = vadd.f32 %v1814, %v1929
        %v1937 = vadd.f32 %v1815, %v1931
        %s1938 = sld [smem:[#allocation2 + $0x14]]
        %s1939 = sld [smem:[#allocation2 + $0x45]]
        %v1940 = vstv %s1938
        %v1941 = vmul.f32 %v1940, %v633
        %v1942 = vmul.f32 %v1940, %v634
        %v1943 = vmul.f32 %v1940, %v635
        %v1944 = vstv %s1939
        %v1945 = vmul.f32 %v1944, %v659
        %v1946 = vmul.f32 %v1944, %v660
        %v1947 = vmul.f32 %v1944, %v661
        %v1948 = vadd.f32 %v1941, %v1945
        %v1949 = vadd.f32 %v1942, %v1946
        %v1950 = vadd.f32 %v1943, %v1947
        %v1954 = vrot.slane %v1948, 2
        %v1955 = vrot.slane %v1949, 2
        %v1956 = vsel %vm1097, %v1954, %v1955
        %v1957 = vrot.slane %v1950, 2
        %v1958 = vsel %vm1097, %v1955, %v1957
        %1959 = vrot.lane.b32.xlu0 %v1956, 122
        %v1960 = vpop.permute.xlu0 %1959
        %1961 = vrot.lane.b32.xlu0 %v1958, 122
        %v1962 = vpop.permute.xlu0 %1961
        %v1965 = vadd.f32 %v1843, %v1960
        %v1966 = vadd.f32 %v1844, %v1962
        %s1967 = sld [smem:[#allocation2 + $0x1b]]
        %s1968 = sld [smem:[#allocation2 + $0x4c]]
        %v1969 = vstv %s1967
        %v1970 = vmul.f32 %v1969, %v633
        %v1971 = vmul.f32 %v1969, %v634
        %v1972 = vmul.f32 %v1969, %v635
        %v1973 = vstv %s1968
        %v1974 = vmul.f32 %v1973, %v659
        %v1975 = vmul.f32 %v1973, %v660
        %v1976 = vmul.f32 %v1973, %v661
        %v1977 = vadd.f32 %v1970, %v1974
        %v1978 = vadd.f32 %v1971, %v1975
        %v1979 = vadd.f32 %v1972, %v1976
        %v1983 = vrot.slane %v1977, 2
        %v1984 = vrot.slane %v1978, 2
        %v1985 = vsel %vm1097, %v1983, %v1984
        %v1986 = vrot.slane %v1979, 2
        %v1987 = vsel %vm1097, %v1984, %v1986
        %1988 = vrot.lane.b32.xlu0 %v1985, 122
        %v1989 = vpop.permute.xlu0 %1988
        %1990 = vrot.lane.b32.xlu0 %v1987, 122
        %v1991 = vpop.permute.xlu0 %1990
        %1992 = vrot.lane.b32.xlu0 %v1986, 122
        %v1993 = vpop.permute.xlu0 %1992
        %v1997 = vadd.f32 %v1875, %v1989
        %v1998 = vadd.f32 %v1876, %v1991
        %v1999 = vadd.f32 %v1877, %v1993
        %s2000 = sld [smem:[#allocation2 + $0x22]]
        %s2001 = sld [smem:[#allocation2 + $0x53]]
        %v2002 = vstv %s2000
        %v2003 = vmul.f32 %v2002, %v633
        %v2004 = vmul.f32 %v2002, %v634
        %v2005 = vmul.f32 %v2002, %v635
        %v2006 = vstv %s2001
        %v2007 = vmul.f32 %v2006, %v659
        %v2008 = vmul.f32 %v2006, %v660
        %v2009 = vmul.f32 %v2006, %v661
        %v2010 = vadd.f32 %v2003, %v2007
        %v2011 = vadd.f32 %v2004, %v2008
        %v2012 = vadd.f32 %v2005, %v2009
        %v2016 = vrot.slane %v2010, 2
        %v2017 = vrot.slane %v2011, 2
        %v2018 = vsel %vm1097, %v2016, %v2017
        %v2019 = vrot.slane %v2012, 2
        %v2020 = vsel %vm1097, %v2017, %v2019
        %2021 = vrot.lane.b32.xlu0 %v2018, 122
        %v2022 = vpop.permute.xlu0 %2021
        %2023 = vrot.lane.b32.xlu0 %v2020, 122
        %v2024 = vpop.permute.xlu0 %2023
        %2025 = vrot.lane.b32.xlu0 %v2019, 122
        %v2026 = vpop.permute.xlu0 %2025
        %v2030 = vadd.f32 %v1902, %v2022
        %v2031 = vadd.f32 %v1903, %v2024
        %v2032 = vadd.f32 %v1904, %v2026
        %s2033 = sld [smem:[#allocation2 + $0x29]]
        %s2034 = sld [smem:[#allocation2 + $0x5a]]
        %v2035 = vstv %s2033
        %v2036 = vmul.f32 %v2035, %v633
        %v2037 = vmul.f32 %v2035, %v634
        %v2038 = vmul.f32 %v2035, %v635
        %v2039 = vstv %s2034
        %v2040 = vmul.f32 %v2039, %v659
        %v2041 = vmul.f32 %v2039, %v660
        %v2042 = vmul.f32 %v2039, %v661
        %v2043 = vadd.f32 %v2036, %v2040
        %v2044 = vadd.f32 %v2037, %v2041
        %v2045 = vadd.f32 %v2038, %v2042
        %v2049 = vrot.slane %v2043, 2
        %v2050 = vrot.slane %v2044, 2
        %v2051 = vsel %vm1097, %v2049, %v2050
        %v2052 = vrot.slane %v2045, 2
        %v2053 = vsel %vm1097, %v2050, %v2052
        %2054 = vrot.lane.b32.xlu0 %v2051, 122
        %v2055 = vpop.permute.xlu0 %2054
        %2056 = vrot.lane.b32.xlu0 %v2053, 122
        %v2057 = vpop.permute.xlu0 %2056
        %2058 = vrot.lane.b32.xlu0 %v2052, 122
        %v2059 = vpop.permute.xlu0 %2058
        %v2063 = vadd.f32 %v1935, %v2055
        %v2064 = vadd.f32 %v1936, %v2057
        %v2065 = vadd.f32 %v1937, %v2059
        %s2066 = sld [smem:[#allocation2 + $0x30]]
        %s2067 = sld [smem:[#allocation2 + $0x61]]
        %v2068 = vstv %s2066
        %v2069 = vmul.f32 %v2068, %v633
        %v2070 = vmul.f32 %v2068, %v634
        %v2071 = vmul.f32 %v2068, %v635
        %v2072 = vstv %s2067
        %v2073 = vmul.f32 %v2072, %v659
        %v2074 = vmul.f32 %v2072, %v660
        %v2075 = vmul.f32 %v2072, %v661
        %v2076 = vadd.f32 %v2069, %v2073
        %v2077 = vadd.f32 %v2070, %v2074
        %v2078 = vadd.f32 %v2071, %v2075
        %v2082 = vrot.slane %v2076, 6
        %v2083 = vrot.slane %v2077, 6
        %v2084 = vsel %vm1032, %v2082, %v2083
        %v2085 = vrot.slane %v2078, 6
        %v2086 = vsel %vm1032, %v2083, %v2085
        %2087 = vrot.lane.b32.xlu0 %v2084, 122
        %v2088 = vpop.permute.xlu0 %2087
        %2089 = vrot.lane.b32.xlu0 %v2086, 122
        %v2090 = vpop.permute.xlu0 %2089
        %v2093 = vadd.f32 %v1965, %v2088
        %v2094 = vadd.f32 %v1966, %v2090
        %v2098 = vrot.slane %v1997, 1
        %v2099 = vrot.slane %v1998, 1
        %v2100 = vsel %vm845, %v2098, %v2099
        %v2101 = vrot.slane %v1999, 1
        %v2102 = vsel %vm845, %v2099, %v2101
        %v2105 = vadd.f32 %v2093, %v2100
        %v2106 = vadd.f32 %v2094, %v2102
        %v2110 = vrot.slane %v2063, 1
        %v2111 = vrot.slane %v2064, 1
        %v2112 = vsel %vm845, %v2110, %v2111
        %v2113 = vrot.slane %v2065, 1
        %v2114 = vsel %vm845, %v2111, %v2113
        %v2118 = vadd.f32 %v2030, %v2112
        %v2119 = vadd.f32 %v2031, %v2114
        %v2120 = vadd.f32 %v2032, %v2113
        %v2124 = vrot.slane %v2118, 2
        %v2125 = vrot.slane %v2119, 2
        %v2126 = vsel %vm1097, %v2124, %v2125
        %v2127 = vrot.slane %v2120, 2
        %v2128 = vsel %vm1097, %v2125, %v2127
        %v2131 = vadd.f32 %v2105, %v2126
        %v2132 = vadd.f32 %v2106, %v2128
        %v2133 = vxor.u32 %v2131, 2147483648
        %v2134 = vxor.u32 %v2132, 2147483648
        %v2135 = vmul.f32 %v2133, 1.442695
        %v2136 = vpow.pop %v2135
        %v2137 = vmul.f32 %v2134, 1.442695
        %v2138 = vpow.pop %v2137
        %v2139 = vadd.f32 %v2136, 1.0
        %v2140 = vadd.f32 %v2138, 1.0
        %v2141 = vrcp.pop %v2139
        %v2142 = vmul.f32 1.0, %v2141
        %v2143 = vrcp.pop %v2140
        %v2144 = vmul.f32 1.0, %v2143
        %v2145 = vcombine.high %v2142, 0.0
        %v2147 = vunpack.c.l.s4 1983009808
        %v2148 = vunpack.c.0.s8 %v2147
        %v2149 = vlaneseq
        %v2150 = vshrl.u32 %v2149, 7
        %v2151 = vsub.s32 %v2148, %v2150
        %v2152 = vrot.slane %v2142, %v2151
        %v2154 = vunpack.c.l.s4 1983009808
        %v2155 = vunpack.c.0.s8 %v2154
        %v2156 = vlaneseq
        %v2157 = vshrl.u32 %v2156, 7
        %v2158 = vsub.s32 %v2155, %v2157
        %v2159 = vrot.slane %v2145, %v2158
        %v2160 = vcombine.high %v2152, 0.0
        %v2162 = vunpack.c.l.s4 1934713408
        %v2163 = vunpack.c.0.s8 %v2162
        %v2164 = vlaneseq
        %v2165 = vshrl.u32 %v2164, 7
        %v2166 = vsub.s32 %v2163, %v2165
        %v2167 = vrot.slane %v2152, %v2166
        %v2169 = vunpack.c.l.s4 1934713408
        %v2170 = vunpack.c.0.s8 %v2169
        %v2171 = vlaneseq
        %v2172 = vshrl.u32 %v2171, 7
        %v2173 = vsub.s32 %v2170, %v2172
        %v2174 = vrot.slane %v2160, %v2173
        %v2175 = vcombine.high %v2159, 0.0
        %v2177 = vunpack.c.l.s4 1934713408
        %v2178 = vunpack.c.0.s8 %v2177
        %v2179 = vlaneseq
        %v2180 = vshrl.u32 %v2179, 7
        %v2181 = vsub.s32 %v2178, %v2180
        %v2182 = vrot.slane %v2159, %v2181
        %v2184 = vunpack.c.l.s4 1934713408
        %v2185 = vunpack.c.0.s8 %v2184
        %v2186 = vlaneseq
        %v2187 = vshrl.u32 %v2186, 7
        %v2188 = vsub.s32 %v2185, %v2187
        %v2189 = vrot.slane %v2175, %v2188
        %v2190 = vcombine.high %v2167, 0.0
        %v2191 = vcombine.high %v2174, 0.0
        %v2192 = vcombine.high %v2182, 0.0
        %v2193 = vcombine.high %v2189, 0.0
        %v2194 = vcombine.high %v2144, 0.0
        %v2196 = vunpack.c.l.s4 1983009808
        %v2197 = vunpack.c.0.s8 %v2196
        %v2198 = vlaneseq
        %v2199 = vshrl.u32 %v2198, 7
        %v2200 = vsub.s32 %v2197, %v2199
        %v2201 = vrot.slane %v2144, %v2200
        %v2203 = vunpack.c.l.s4 1983009808
        %v2204 = vunpack.c.0.s8 %v2203
        %v2205 = vlaneseq
        %v2206 = vshrl.u32 %v2205, 7
        %v2207 = vsub.s32 %v2204, %v2206
        %v2208 = vrot.slane %v2194, %v2207
        %v2209 = vcombine.high %v2201, 0.0
        %v2211 = vunpack.c.l.s4 1934713408
        %v2212 = vunpack.c.0.s8 %v2211
        %v2213 = vlaneseq
        %v2214 = vshrl.u32 %v2213, 7
        %v2215 = vsub.s32 %v2212, %v2214
        %v2216 = vrot.slane %v2201, %v2215
        %v2218 = vunpack.c.l.s4 1934713408
        %v2219 = vunpack.c.0.s8 %v2218
        %v2220 = vlaneseq
        %v2221 = vshrl.u32 %v2220, 7
        %v2222 = vsub.s32 %v2219, %v2221
        %v2223 = vrot.slane %v2209, %v2222
        %v2224 = vcombine.high %v2208, 0.0
        %v2226 = vunpack.c.l.s4 1934713408
        %v2227 = vunpack.c.0.s8 %v2226
        %v2228 = vlaneseq
        %v2229 = vshrl.u32 %v2228, 7
        %v2230 = vsub.s32 %v2227, %v2229
        %v2231 = vrot.slane %v2208, %v2230
        %v2233 = vunpack.c.l.s4 1934713408
        %v2234 = vunpack.c.0.s8 %v2233
        %v2235 = vlaneseq
        %v2236 = vshrl.u32 %v2235, 7
        %v2237 = vsub.s32 %v2234, %v2236
        %v2238 = vrot.slane %v2224, %v2237
        %v2239 = vcombine.high %v2216, 0.0
        %v2240 = vcombine.high %v2223, 0.0
        %v2241 = vcombine.high %v2231, 0.0
        %v2242 = vcombine.high %v2238, 0.0
        %2244 = vrot.lane.b32.xlu0 %v2190, 16
        %v2245 = vpop.permute.xlu0 %2244
        %2248 = vrot.lane.b32.xlu0 %v2174, 32
        %v2249 = vpop.permute.xlu0 %2248
        %2252 = vrot.lane.b32.xlu0 %v2191, 48
        %v2253 = vpop.permute.xlu0 %2252
        %2256 = vrot.lane.b32.xlu0 %v2182, 64
        %v2257 = vpop.permute.xlu0 %2256
        %2260 = vrot.lane.b32.xlu0 %v2192, 80
        %v2261 = vpop.permute.xlu0 %2260
        %2264 = vrot.lane.b32.xlu0 %v2189, 96
        %v2265 = vpop.permute.xlu0 %2264
        %2268 = vrot.lane.b32.xlu0 %v2193, 112
        %v2269 = vpop.permute.xlu0 %2268
        %2272 = vrot.lane.b32.xlu0 %v2239, 16
        %v2273 = vpop.permute.xlu0 %2272
        %2276 = vrot.lane.b32.xlu0 %v2223, 32
        %v2277 = vpop.permute.xlu0 %2276
        %2280 = vrot.lane.b32.xlu0 %v2240, 48
        %v2281 = vpop.permute.xlu0 %2280
        %2284 = vrot.lane.b32.xlu0 %v2231, 64
        %v2285 = vpop.permute.xlu0 %2284
        %2288 = vrot.lane.b32.xlu0 %v2241, 80
        %v2289 = vpop.permute.xlu0 %2288
        %2292 = vrot.lane.b32.xlu0 %v2238, 96
        %v2293 = vpop.permute.xlu0 %2292
        %2296 = vrot.lane.b32.xlu0 %v2242, 112
        %v2297 = vpop.permute.xlu0 %2296
        %vm2299 = vcmask 130048
        %v2300 = vsel %vm2299, %v2167, %v2245
        %vm2301 = vcmask 261120
        %v2302 = vsel %vm2301, %v2300, %v2249
        %vm2303 = vcmask 392192
        %v2304 = vsel %vm2303, %v2302, %v2253
        %vm2305 = vcmask 523264
        %v2306 = vsel %vm2305, %v2304, %v2257
        %vm2307 = vcmask 654336
        %v2308 = vsel %vm2307, %v2306, %v2261
        %vm2309 = vcmask 785408
        %v2310 = vsel %vm2309, %v2308, %v2265
        %vm2311 = vcmask 916480
        %v2312 = vsel %vm2311, %v2310, %v2269
        %v2313 = vsel %vm2299, %v2216, %v2273
        %v2314 = vsel %vm2301, %v2313, %v2277
        %v2315 = vsel %vm2303, %v2314, %v2281
        %v2316 = vsel %vm2305, %v2315, %v2285
        %v2317 = vsel %vm2307, %v2316, %v2289
        %v2318 = vsel %vm2309, %v2317, %v2293
        %v2319 = vsel %vm2311, %v2318, %v2297
        %v2320 = vlaneseq
        %v2321 = vshrl.u32 %v2320, 7
        %v2322 = vsub.s32 0, %v2321
        %v2323 = vrot.slane %v2312, %v2322
        %v2324 = vlaneseq
        %v2325 = vshrl.u32 %v2324, 7
        %v2326 = vsub.s32 0, %v2325
        %v2327 = vrot.slane %v2319, %v2326
        %v2328 = vmul.f32 %v294, %v2323
        %v2329 = vmul.f32 %v295, %v2327
        %2330 = vst [vmem:[%s238] sm:$0xff] %v2328
        %2331 = vst [vmem:[%s238 + $0x8] sm:$0xff] %v2329
        %s2332 = sand.u32 %s120, 1
        %s2333 = scalar_lea.sflag [#allocation4], %s2332
        %s2334 = sand.u32 %s120, 1
        %s2335 = smul.addr %s2334, 16
        %s2336 = scalar_lea.vmem [#allocation9], %s2335
        // Predicated region
        $region49: #{tpu_custom_call.1} parent=35 // pred_check
          %p2337 = pneg %p130
        $region50: #{tpu_custom_call.1} parent=35 // pred_check_branch
          %2339 = sbr.rel (%p2337) target = $region52
        $region51: #{tpu_custom_call.1} parent=35 // pred_region
          %s2341 = ssub.s32 256, 256
          %2342 = vsyncadd %s2333, %s2341
          %s2343 = smul.addr %s23, 2
          %s2344 = smul.addr %s2343, 128
          %s2345 = scalar_lea.hbm %s4, %s2344
          %s2347 = sshll.u32 %s2336, 4
          %s2348 = int_to_ptr.vmem [resolvable:$true] %s2347
          %2350 = dma.vmem_to_hbm [thread:$0]  %s2348, 256, %s2345, %s2333
        $region52: #{tpu_custom_call.1} parent=35 // pred_fallthru
          _
      $region36: #{tpu_custom_call.1} parent=5 // pred_fallthru
        _
      %p2351 = scmp.le.s32.totalorder 2, %s18
      // Predicated region
      $region53: #{tpu_custom_call.1} parent=5 // pred_check
        %p2352 = pneg %p2351
      $region54: #{tpu_custom_call.1} parent=5 // pred_check_branch
        %2354 = sbr.rel (%p2352) target = $region56
      $region55: #{tpu_custom_call.1} parent=5 // pred_region
        %s2355 = ssub.s32 %s18, 2
        // Predicated region
        $region57: #{tpu_custom_call.1} parent=55 // pred_check
          %p2356 = pneg %p136
        $region58: #{tpu_custom_call.1} parent=55 // pred_check_branch
          %2358 = sbr.rel (%p2356) target = $region60
        $region59: #{tpu_custom_call.1} parent=55 // pred_region
          %s2359 = sand.u32 %s121, 1
          %s2360 = scalar_lea.sflag [#allocation4], %s2359
          %s2361 = sand.u32 %s121, 1
          %s2362 = smul.addr %s2361, 16
          %s2363 = scalar_lea.vmem [#allocation9], %s2362
          %2364 = dma.done %s2360, 256
        $region60: #{tpu_custom_call.1} parent=55 // pred_fallthru
          _
      $region56: #{tpu_custom_call.1} parent=5 // pred_fallthru
        _
    $region6: #{tpu_custom_call.1} parent=1 // loop_footer
      %s22 = sadd.s32 1, %s18
    $region7: #{tpu_custom_call.1} parent=1 // loop_footer_branch
      %17 = sbr.rel target = $region3
    $region8: #{tpu_custom_call.1} parent=1 // loop_exit
      _
    %2365 = vsyncpa [#allocation3], 1
    %s2366 = scalar_lea.sflag [#allocation3], 1
    %2367 = vsyncpa %s2366, 1
    %2368 = vsyncpa [#allocation8], 1
    %s2369 = scalar_lea.sflag [#allocation8], 1
    %2370 = vsyncpa %s2369, 1
    %2371 = vsyncpa [#allocation4], 1
    %s2372 = scalar_lea.sflag [#allocation4], 1
    %2373 = vsyncpa %s2372, 1
    %2374 = vsyncpa [#allocation5], 1
    %s2375 = scalar_lea.sflag [#allocation5], 1
    %2376 = vsyncpa %s2375, 1

</llo_original>
